<compile_context>
chip_gen: v5e
topology: v5e:2x2
jax: 0.10.0
libtpu: 0.0.40
codegen_flags: <defaults>
</compile_context>

<pallas_src>
import functools
import math

import jax
import jax.numpy as jnp
from jax.experimental import pallas as pl
from jax.experimental.pallas import tpu as pltpu


# ----------------------------------------------------------------------------
# Pallas kernel: one (batch, head, q-tile) step
# ----------------------------------------------------------------------------
def _invariant_attn_kernel(cq_ref, ck_ref,
                           q0_ref, q1_ref, q2_ref, q3_ref,
                           k0_ref, k1_ref, k2_ref, k3_ref,
                           v_ref, out_ref, attn_ref, *, mxu_dtype, precision):
    # cq_ref : [tq, 16]  f32  query pose coefficients (softmax scale folded in)
    # ck_ref : [Nk, 16]  f32  key pose coefficients
    # q*_ref : [tq, C4]       query components j = 0..3
    # k*_ref : [Nk, C4]       key components   j = 0..3
    # v_ref  : [Nk, Cv]       values (storage dtype, never up-cast)
    # out_ref: [tq, Cv]
    # attn_ref:[tq, Nk]
    f32 = jnp.float32

    def mix(coef_ref, comp_refs):
        # mixed_i = sum_j coef[:, 4*i+j] * comp_j   (per-row scalars, pure VPU)
        comps = [r[...].astype(f32) for r in comp_refs]            # 4 x [rows, C4]
        mixed = []
        for i in range(4):
            acc = None
            for j in range(4):
                c = coef_ref[:, 4 * i + j:4 * i + j + 1]           # [rows, 1]
                term = c * comps[j]
                acc = term if acc is None else acc + term
            mixed.append(acc)
        return mixed

    qx = mix(cq_ref, (q0_ref, q1_ref, q2_ref, q3_ref))   # 4 x [tq, C4] f32
    kx = mix(ck_ref, (k0_ref, k1_ref, k2_ref, k3_ref))   # 4 x [Nk, C4] f32

    # scores: 4 partial MXU contractions of width C4, f32 accumulation
    s = None
    for i in range(4):
        part = jax.lax.dot_general(
            qx[i].astype(mxu_dtype), kx[i].astype(mxu_dtype),
            (((1,), (1,)), ((), ())),
            preferred_element_type=f32, precision=precision)       # [tq, Nk]
        s = part if s is None else s + part

    # softmax over keys (1/sqrt(C) already folded into the query coefficients)
    m = jnp.max(s, axis=-1, keepdims=True)
    e = jnp.exp(s - m)
    attn = e * pl.reciprocal(jnp.sum(e, axis=-1, keepdims=True), approx=True)

    v = v_ref[...]                                                 # [Nk, Cv]
    out = jax.lax.dot_general(
        attn.astype(v.dtype), v,
        (((1,), (0,)), ((), ())),
        preferred_element_type=f32, precision=precision)           # [tq, Cv]

    out_ref[...] = out.astype(out_ref.dtype)
    attn_ref[...] = attn.astype(attn_ref.dtype)


# ----------------------------------------------------------------------------
# Glue (plain JAX): pose construction, coefficient tables, layout, pallas_call
# ----------------------------------------------------------------------------
def _invert_se3(R, t):
    B, N = R.shape[0], R.shape[1]
    R_inv = jnp.swapaxes(R, -1, -2)
    t_inv = -jnp.einsum('...ij,...j->...i', R_inv, t)
    M = jnp.tile(jnp.eye(4, dtype=R.dtype)[None, None], (B, N, 1, 1))
    M = M.at[..., :3, :3].set(R_inv)
    M = M.at[..., :3, 3].set(t_inv)
    return M


def _pick_q_tile(nq, cap):
    if nq <= cap:
        return nq
    for t in range(cap - cap % 8, 7, -8):        # multiple of 8 that divides Nq
        if nq % t == 0:
            return t
    return nq                                    # fallback: no tiling


def invariant_pose_attention(q, k, v, x_rot, x_trans, z_rot, z_trans, *,
                             attn_dtype=None, mxu_dtype=None, max_tq=256):
    B, H, Nq, C = q.shape
    Nk = k.shape[2]
    Cv = v.shape[3]
    assert C % 4 == 0, "feature dim must be divisible by 4 (SE(3) 4-vectors)"
    C4 = C // 4
    f32 = jnp.float32

    attn_dtype = attn_dtype or q.dtype
    mxu_dtype = mxu_dtype or q.dtype
    # True-f32 MXU path when feeding f32; native (fast) path when feeding bf16.
    precision = (jax.lax.Precision.HIGHEST
                 if jnp.dtype(mxu_dtype) == jnp.dtype(jnp.float32)
                 else jax.lax.Precision.DEFAULT)

    # ---- set_relative_poses (SE(3) branch), in f32 --------------------------
    Xq_inv = _invert_se3(x_rot.astype(f32), x_trans.astype(f32))    # [B,Nq,4,4]
    Xk = jnp.tile(jnp.eye(4, dtype=f32)[None, None], (B, Nk, 1, 1))
    Xk = Xk.at[..., :3, :3].set(z_rot.astype(f32))
    Xk = Xk.at[..., :3, 3].set(z_trans.astype(f32))

    # ---- compact pose-mix coefficient tables, flat index = 4*i + j ----------
    # query: qx[..., c, i] = sum_j Xq_inv[n, j, i] * q[..., c, j]  (scale folded)
    # key:   kx[..., c, i] = sum_j Xk[n, i, j]     * k[..., c, j]
    cq = (jnp.swapaxes(Xq_inv, -1, -2) * (1.0 / math.sqrt(C))).reshape(B, Nq, 16)
    ck = Xk.reshape(B, Nk, 16)

    # ---- host-side component split: channel c*4+j -> component j, lane c ----
    def comps(x):
        b, h, n, c = x.shape
        xr = x.reshape(b, h, n, c // 4, 4)
        return [xr[..., j] for j in range(4)]                       # 4 x [B,H,N,C4]
    q_comps = comps(q)
    k_comps = comps(k)

    # ---- tiling & grid -------------------------------------------------------
    tq = _pick_q_tile(Nq, max_tq)
    grid = (B, H, Nq // tq)

    kernel = functools.partial(_invariant_attn_kernel,
                               mxu_dtype=mxu_dtype, precision=precision)

    qc_spec = pl.BlockSpec((None, None, tq, C4), lambda b, h, qi: (b, h, qi, 0))
    kc_spec = pl.BlockSpec((None, None, Nk, C4), lambda b, h, qi: (b, h, 0, 0))

    out, attn = pl.pallas_call(
        kernel,
        out_shape=(jax.ShapeDtypeStruct((B, H, Nq, Cv), v.dtype),
                   jax.ShapeDtypeStruct((B, H, Nq, Nk), attn_dtype)),
        grid=grid,
        in_specs=[
            # q coefficients: depend on (b, q-tile)
            pl.BlockSpec((None, tq, 16), lambda b, h, qi: (b, qi, 0)),
            # k coefficients: depend on b only -> resident across heads & q tiles
            pl.BlockSpec((None, Nk, 16), lambda b, h, qi: (b, 0, 0)),
            # query components: (b, h, q-tile)
            qc_spec, qc_spec, qc_spec, qc_spec,
            # key components: independent of the q-tile axis -> stay resident
            kc_spec, kc_spec, kc_spec, kc_spec,
            # values: independent of the q-tile axis -> stay resident
            pl.BlockSpec((None, None, Nk, Cv), lambda b, h, qi: (b, h, 0, 0)),
        ],
        out_specs=(
            pl.BlockSpec((None, None, tq, Cv), lambda b, h, qi: (b, h, qi, 0)),
            pl.BlockSpec((None, None, tq, Nk), lambda b, h, qi: (b, h, qi, 0)),
        ),
        compiler_params=pltpu.CompilerParams(
            dimension_semantics=("parallel", "parallel", "arbitrary"),
            vmem_limit_bytes=32 * 1024 * 1024),   # safe on v5e/v6e/v7x
    )(cq, ck, *q_comps, *k_comps, v)
    return out, attn


# ----------------------------------------------------------------------------
# Pure-JAX reference (mirrors the PyTorch module, v_transform=False)
# ----------------------------------------------------------------------------
def reference(q, k, v, x_rot, x_trans, z_rot, z_trans):
    B, H, Nq, C = q.shape
    Nk = k.shape[2]
    hp = jax.lax.Precision.HIGHEST
    Xq = _invert_se3(x_rot, x_trans)
    Xk = jnp.tile(jnp.eye(4, dtype=q.dtype)[None, None], (B, Nk, 1, 1))
    Xk = Xk.at[..., :3, :3].set(z_rot).at[..., :3, 3].set(z_trans)
    qc = q.reshape(B, H, Nq, C // 4, 4)
    kc = k.reshape(B, H, Nk, C // 4, 4)
    qx = jnp.einsum('bnji,bhncj->bhnci', Xq, qc, precision=hp).reshape(B, H, Nq, C)
    kx = jnp.einsum('bnij,bhncj->bhnci', Xk, kc, precision=hp).reshape(B, H, Nk, C)
    s = jnp.einsum('bhqc,bhkc->bhqk', qx, kx, precision=hp) / math.sqrt(C)
    attn = jax.nn.softmax(s, axis=-1)
    out = jnp.einsum('bhqk,bhkc->bhqc', attn, v, precision=hp)
    return out, attn


def _quat_to_rot(quat):
    qn = quat / jnp.linalg.norm(quat, axis=-1, keepdims=True)
    w, x, y, z = qn[..., 0], qn[..., 1], qn[..., 2], qn[..., 3]
    return jnp.stack([
        jnp.stack([1 - 2 * (y * y + z * z), 2 * (x * y - w * z), 2 * (x * z + w * y)], -1),
        jnp.stack([2 * (x * y + w * z), 1 - 2 * (x * x + z * z), 2 * (y * z - w * x)], -1),
        jnp.stack([2 * (x * z - w * y), 2 * (y * z + w * x), 1 - 2 * (x * x + y * y)], -1),
    ], axis=-2)


def _make_inputs(key, B, H, Nq, Nk, C, Cv):
    ks = jax.random.split(key, 7)
    q = jax.random.normal(ks[0], (B, H, Nq, C), jnp.float32)
    k = jax.random.normal(ks[1], (B, H, Nk, C), jnp.float32)
    v = jax.random.normal(ks[2], (B, H, Nk, Cv), jnp.float32)
    x_rot = _quat_to_rot(jax.random.normal(ks[3], (B, Nq, 4), jnp.float32))
    x_trans = jax.random.normal(ks[4], (B, Nq, 3), jnp.float32)
    z_rot = _quat_to_rot(jax.random.normal(ks[5], (B, Nk, 4), jnp.float32))
    z_trans = jax.random.normal(ks[6], (B, Nk, 3), jnp.float32)
    return q, k, v, x_rot, x_trans, z_rot, z_trans


if __name__ == "__main__":
    key = jax.random.PRNGKey(0)
    k1, k2 = jax.random.split(key)
    TOL = dict(atol=5e-3, rtol=5e-3)

    # Test 1: small module-like shapes (single q tile).
    args1 = _make_inputs(k1, B=2, H=2, Nq=8, Nk=8, C=32, Cv=32)
    out1, attn1 = invariant_pose_attention(*args1)
    jax.block_until_ready((out1, attn1))
    out1_ref, attn1_ref = reference(*args1)
    assert jnp.allclose(out1, out1_ref, **TOL), "out mismatch (test 1)"
    assert jnp.allclose(attn1, attn1_ref, **TOL), "attn mismatch (test 1)"

    # Test 2: exercises q-tiling (max_tq=64 -> 2 q tiles) and multiple heads.
    args2 = _make_inputs(k2, B=2, H=4, Nq=128, Nk=64, C=64, Cv=64)
    out2, attn2 = invariant_pose_attention(*args2, max_tq=64)
    jax.block_until_ready((out2, attn2))
    out2_ref, attn2_ref = reference(*args2)
    assert jnp.allclose(out2, out2_ref, **TOL), "out mismatch (test 2)"
    assert jnp.allclose(attn2, attn2_ref, **TOL), "attn mismatch (test 2)"

    print("KERNEL_OK")
</pallas_src>

<mosaic_0001>
module attributes {stable_mosaic.version = 11 : i64} {
  func.func @_invariant_attn_kernel(%arg0: i32, %arg1: i32, %arg2: i32, %arg3: memref<1x8x16xf32, #tpu.memory_space<vmem>>, %arg4: memref<1x8x16xf32, #tpu.memory_space<vmem>>, %arg5: memref<1x1x8x8xf32, #tpu.memory_space<vmem>>, %arg6: memref<1x1x8x8xf32, #tpu.memory_space<vmem>>, %arg7: memref<1x1x8x8xf32, #tpu.memory_space<vmem>>, %arg8: memref<1x1x8x8xf32, #tpu.memory_space<vmem>>, %arg9: memref<1x1x8x8xf32, #tpu.memory_space<vmem>>, %arg10: memref<1x1x8x8xf32, #tpu.memory_space<vmem>>, %arg11: memref<1x1x8x8xf32, #tpu.memory_space<vmem>>, %arg12: memref<1x1x8x8xf32, #tpu.memory_space<vmem>>, %arg13: memref<1x1x8x32xf32, #tpu.memory_space<vmem>>, %arg14: memref<1x1x8x32xf32, #tpu.memory_space<vmem>>, %arg15: memref<1x1x8x8xf32, #tpu.memory_space<vmem>>) attributes {dimension_semantics = [#tpu.dimension_semantics<parallel>, #tpu.dimension_semantics<parallel>, #tpu.dimension_semantics<arbitrary>], iteration_bounds = array<i64: 2, 2, 1>, scalar_prefetch = 0 : i64, scratch_operands = 0 : i64, tpu.core_type = #tpu.core_type<tc>, window_params = [{transform_indices = @transform_0, window_bounds = array<i64: 1, 8, 16>}, {transform_indices = @transform_1, window_bounds = array<i64: 1, 8, 16>}, {transform_indices = @transform_2, window_bounds = array<i64: 1, 1, 8, 8>}, {transform_indices = @transform_3, window_bounds = array<i64: 1, 1, 8, 8>}, {transform_indices = @transform_4, window_bounds = array<i64: 1, 1, 8, 8>}, {transform_indices = @transform_5, window_bounds = array<i64: 1, 1, 8, 8>}, {transform_indices = @transform_6, window_bounds = array<i64: 1, 1, 8, 8>}, {transform_indices = @transform_7, window_bounds = array<i64: 1, 1, 8, 8>}, {transform_indices = @transform_8, window_bounds = array<i64: 1, 1, 8, 8>}, {transform_indices = @transform_9, window_bounds = array<i64: 1, 1, 8, 8>}, {transform_indices = @transform_10, window_bounds = array<i64: 1, 1, 8, 32>}, {transform_indices = @transform_11, window_bounds = array<i64: 1, 1, 8, 32>}, {transform_indices = @transform_12, window_bounds = array<i64: 1, 1, 8, 8>}]} {
    %c0 = arith.constant 0 : index
    %c0_0 = arith.constant 0 : index
    %c0_1 = arith.constant 0 : index
    %c0_2 = arith.constant 0 : index
    %0 = vector.load %arg5[%c0, %c0_0, %c0_1, %c0_2] : memref<1x1x8x8xf32, #tpu.memory_space<vmem>>, vector<1x1x8x8xf32>
    %1 = vector.shape_cast %0 : vector<1x1x8x8xf32> to vector<8x8xf32>
    %c0_3 = arith.constant 0 : index
    %c0_4 = arith.constant 0 : index
    %c0_5 = arith.constant 0 : index
    %c0_6 = arith.constant 0 : index
    %2 = vector.load %arg6[%c0_3, %c0_4, %c0_5, %c0_6] : memref<1x1x8x8xf32, #tpu.memory_space<vmem>>, vector<1x1x8x8xf32>
    %3 = vector.shape_cast %2 : vector<1x1x8x8xf32> to vector<8x8xf32>
    %c0_7 = arith.constant 0 : index
    %c0_8 = arith.constant 0 : index
    %c0_9 = arith.constant 0 : index
    %c0_10 = arith.constant 0 : index
    %4 = vector.load %arg7[%c0_7, %c0_8, %c0_9, %c0_10] : memref<1x1x8x8xf32, #tpu.memory_space<vmem>>, vector<1x1x8x8xf32>
    %5 = vector.shape_cast %4 : vector<1x1x8x8xf32> to vector<8x8xf32>
    %c0_11 = arith.constant 0 : index
    %c0_12 = arith.constant 0 : index
    %c0_13 = arith.constant 0 : index
    %c0_14 = arith.constant 0 : index
    %6 = vector.load %arg8[%c0_11, %c0_12, %c0_13, %c0_14] : memref<1x1x8x8xf32, #tpu.memory_space<vmem>>, vector<1x1x8x8xf32>
    %7 = vector.shape_cast %6 : vector<1x1x8x8xf32> to vector<8x8xf32>
    %c0_15 = arith.constant 0 : index
    %c0_16 = arith.constant 0 : index
    %c0_17 = arith.constant 0 : index
    %8 = vector.load %arg3[%c0_15, %c0_16, %c0_17] : memref<1x8x16xf32, #tpu.memory_space<vmem>>, vector<1x8x1xf32>
    %9 = vector.shape_cast %8 : vector<1x8x1xf32> to vector<8x1xf32>
    %10 = vector.broadcast %9 : vector<8x1xf32> to vector<8x8xf32>
    %11 = arith.mulf %10, %1 : vector<8x8xf32>
    %c0_18 = arith.constant 0 : index
    %c0_19 = arith.constant 0 : index
    %c1 = arith.constant 1 : index
    %12 = vector.load %arg3[%c0_18, %c0_19, %c1] : memref<1x8x16xf32, #tpu.memory_space<vmem>>, vector<1x8x1xf32>
    %13 = vector.shape_cast %12 : vector<1x8x1xf32> to vector<8x1xf32>
    %14 = vector.broadcast %13 : vector<8x1xf32> to vector<8x8xf32>
    %15 = arith.mulf %14, %3 : vector<8x8xf32>
    %16 = arith.addf %11, %15 : vector<8x8xf32>
    %c0_20 = arith.constant 0 : index
    %c0_21 = arith.constant 0 : index
    %c2 = arith.constant 2 : index
    %17 = vector.load %arg3[%c0_20, %c0_21, %c2] : memref<1x8x16xf32, #tpu.memory_space<vmem>>, vector<1x8x1xf32>
    %18 = vector.shape_cast %17 : vector<1x8x1xf32> to vector<8x1xf32>
    %19 = vector.broadcast %18 : vector<8x1xf32> to vector<8x8xf32>
    %20 = arith.mulf %19, %5 : vector<8x8xf32>
    %21 = arith.addf %16, %20 : vector<8x8xf32>
    %c0_22 = arith.constant 0 : index
    %c0_23 = arith.constant 0 : index
    %c3 = arith.constant 3 : index
    %22 = vector.load %arg3[%c0_22, %c0_23, %c3] : memref<1x8x16xf32, #tpu.memory_space<vmem>>, vector<1x8x1xf32>
    %23 = vector.shape_cast %22 : vector<1x8x1xf32> to vector<8x1xf32>
    %24 = vector.broadcast %23 : vector<8x1xf32> to vector<8x8xf32>
    %25 = arith.mulf %24, %7 : vector<8x8xf32>
    %26 = arith.addf %21, %25 : vector<8x8xf32>
    %c0_24 = arith.constant 0 : index
    %c0_25 = arith.constant 0 : index
    %c4 = arith.constant 4 : index
    %27 = vector.load %arg3[%c0_24, %c0_25, %c4] : memref<1x8x16xf32, #tpu.memory_space<vmem>>, vector<1x8x1xf32>
    %28 = vector.shape_cast %27 : vector<1x8x1xf32> to vector<8x1xf32>
    %29 = vector.broadcast %28 : vector<8x1xf32> to vector<8x8xf32>
    %30 = arith.mulf %29, %1 : vector<8x8xf32>
    %c0_26 = arith.constant 0 : index
    %c0_27 = arith.constant 0 : index
    %c5 = arith.constant 5 : index
    %31 = vector.load %arg3[%c0_26, %c0_27, %c5] : memref<1x8x16xf32, #tpu.memory_space<vmem>>, vector<1x8x1xf32>
    %32 = vector.shape_cast %31 : vector<1x8x1xf32> to vector<8x1xf32>
    %33 = vector.broadcast %32 : vector<8x1xf32> to vector<8x8xf32>
    %34 = arith.mulf %33, %3 : vector<8x8xf32>
    %35 = arith.addf %30, %34 : vector<8x8xf32>
    %c0_28 = arith.constant 0 : index
    %c0_29 = arith.constant 0 : index
    %c6 = arith.constant 6 : index
    %36 = vector.load %arg3[%c0_28, %c0_29, %c6] : memref<1x8x16xf32, #tpu.memory_space<vmem>>, vector<1x8x1xf32>
    %37 = vector.shape_cast %36 : vector<1x8x1xf32> to vector<8x1xf32>
    %38 = vector.broadcast %37 : vector<8x1xf32> to vector<8x8xf32>
    %39 = arith.mulf %38, %5 : vector<8x8xf32>
    %40 = arith.addf %35, %39 : vector<8x8xf32>
    %c0_30 = arith.constant 0 : index
    %c0_31 = arith.constant 0 : index
    %c7 = arith.constant 7 : index
    %41 = vector.load %arg3[%c0_30, %c0_31, %c7] : memref<1x8x16xf32, #tpu.memory_space<vmem>>, vector<1x8x1xf32>
    %42 = vector.shape_cast %41 : vector<1x8x1xf32> to vector<8x1xf32>
    %43 = vector.broadcast %42 : vector<8x1xf32> to vector<8x8xf32>
    %44 = arith.mulf %43, %7 : vector<8x8xf32>
    %45 = arith.addf %40, %44 : vector<8x8xf32>
    %c0_32 = arith.constant 0 : index
    %c0_33 = arith.constant 0 : index
    %c8 = arith.constant 8 : index
    %46 = vector.load %arg3[%c0_32, %c0_33, %c8] : memref<1x8x16xf32, #tpu.memory_space<vmem>>, vector<1x8x1xf32>
    %47 = vector.shape_cast %46 : vector<1x8x1xf32> to vector<8x1xf32>
    %48 = vector.broadcast %47 : vector<8x1xf32> to vector<8x8xf32>
    %49 = arith.mulf %48, %1 : vector<8x8xf32>
    %c0_34 = arith.constant 0 : index
    %c0_35 = arith.constant 0 : index
    %c9 = arith.constant 9 : index
    %50 = vector.load %arg3[%c0_34, %c0_35, %c9] : memref<1x8x16xf32, #tpu.memory_space<vmem>>, vector<1x8x1xf32>
    %51 = vector.shape_cast %50 : vector<1x8x1xf32> to vector<8x1xf32>
    %52 = vector.broadcast %51 : vector<8x1xf32> to vector<8x8xf32>
    %53 = arith.mulf %52, %3 : vector<8x8xf32>
    %54 = arith.addf %49, %53 : vector<8x8xf32>
    %c0_36 = arith.constant 0 : index
    %c0_37 = arith.constant 0 : index
    %c10 = arith.constant 10 : index
    %55 = vector.load %arg3[%c0_36, %c0_37, %c10] : memref<1x8x16xf32, #tpu.memory_space<vmem>>, vector<1x8x1xf32>
    %56 = vector.shape_cast %55 : vector<1x8x1xf32> to vector<8x1xf32>
    %57 = vector.broadcast %56 : vector<8x1xf32> to vector<8x8xf32>
    %58 = arith.mulf %57, %5 : vector<8x8xf32>
    %59 = arith.addf %54, %58 : vector<8x8xf32>
    %c0_38 = arith.constant 0 : index
    %c0_39 = arith.constant 0 : index
    %c11 = arith.constant 11 : index
    %60 = vector.load %arg3[%c0_38, %c0_39, %c11] : memref<1x8x16xf32, #tpu.memory_space<vmem>>, vector<1x8x1xf32>
    %61 = vector.shape_cast %60 : vector<1x8x1xf32> to vector<8x1xf32>
    %62 = vector.broadcast %61 : vector<8x1xf32> to vector<8x8xf32>
    %63 = arith.mulf %62, %7 : vector<8x8xf32>
    %64 = arith.addf %59, %63 : vector<8x8xf32>
    %c0_40 = arith.constant 0 : index
    %c0_41 = arith.constant 0 : index
    %c12 = arith.constant 12 : index
    %65 = vector.load %arg3[%c0_40, %c0_41, %c12] : memref<1x8x16xf32, #tpu.memory_space<vmem>>, vector<1x8x1xf32>
    %66 = vector.shape_cast %65 : vector<1x8x1xf32> to vector<8x1xf32>
    %67 = vector.broadcast %66 : vector<8x1xf32> to vector<8x8xf32>
    %68 = arith.mulf %67, %1 : vector<8x8xf32>
    %c0_42 = arith.constant 0 : index
    %c0_43 = arith.constant 0 : index
    %c13 = arith.constant 13 : index
    %69 = vector.load %arg3[%c0_42, %c0_43, %c13] : memref<1x8x16xf32, #tpu.memory_space<vmem>>, vector<1x8x1xf32>
    %70 = vector.shape_cast %69 : vector<1x8x1xf32> to vector<8x1xf32>
    %71 = vector.broadcast %70 : vector<8x1xf32> to vector<8x8xf32>
    %72 = arith.mulf %71, %3 : vector<8x8xf32>
    %73 = arith.addf %68, %72 : vector<8x8xf32>
    %c0_44 = arith.constant 0 : index
    %c0_45 = arith.constant 0 : index
    %c14 = arith.constant 14 : index
    %74 = vector.load %arg3[%c0_44, %c0_45, %c14] : memref<1x8x16xf32, #tpu.memory_space<vmem>>, vector<1x8x1xf32>
    %75 = vector.shape_cast %74 : vector<1x8x1xf32> to vector<8x1xf32>
    %76 = vector.broadcast %75 : vector<8x1xf32> to vector<8x8xf32>
    %77 = arith.mulf %76, %5 : vector<8x8xf32>
    %78 = arith.addf %73, %77 : vector<8x8xf32>
    %c0_46 = arith.constant 0 : index
    %c0_47 = arith.constant 0 : index
    %c15 = arith.constant 15 : index
    %79 = vector.load %arg3[%c0_46, %c0_47, %c15] : memref<1x8x16xf32, #tpu.memory_space<vmem>>, vector<1x8x1xf32>
    %80 = vector.shape_cast %79 : vector<1x8x1xf32> to vector<8x1xf32>
    %81 = vector.broadcast %80 : vector<8x1xf32> to vector<8x8xf32>
    %82 = arith.mulf %81, %7 : vector<8x8xf32>
    %83 = arith.addf %78, %82 : vector<8x8xf32>
    %c0_48 = arith.constant 0 : index
    %c0_49 = arith.constant 0 : index
    %c0_50 = arith.constant 0 : index
    %c0_51 = arith.constant 0 : index
    %84 = vector.load %arg9[%c0_48, %c0_49, %c0_50, %c0_51] : memref<1x1x8x8xf32, #tpu.memory_space<vmem>>, vector<1x1x8x8xf32>
    %85 = vector.shape_cast %84 : vector<1x1x8x8xf32> to vector<8x8xf32>
    %c0_52 = arith.constant 0 : index
    %c0_53 = arith.constant 0 : index
    %c0_54 = arith.constant 0 : index
    %c0_55 = arith.constant 0 : index
    %86 = vector.load %arg10[%c0_52, %c0_53, %c0_54, %c0_55] : memref<1x1x8x8xf32, #tpu.memory_space<vmem>>, vector<1x1x8x8xf32>
    %87 = vector.shape_cast %86 : vector<1x1x8x8xf32> to vector<8x8xf32>
    %c0_56 = arith.constant 0 : index
    %c0_57 = arith.constant 0 : index
    %c0_58 = arith.constant 0 : index
    %c0_59 = arith.constant 0 : index
    %88 = vector.load %arg11[%c0_56, %c0_57, %c0_58, %c0_59] : memref<1x1x8x8xf32, #tpu.memory_space<vmem>>, vector<1x1x8x8xf32>
    %89 = vector.shape_cast %88 : vector<1x1x8x8xf32> to vector<8x8xf32>
    %c0_60 = arith.constant 0 : index
    %c0_61 = arith.constant 0 : index
    %c0_62 = arith.constant 0 : index
    %c0_63 = arith.constant 0 : index
    %90 = vector.load %arg12[%c0_60, %c0_61, %c0_62, %c0_63] : memref<1x1x8x8xf32, #tpu.memory_space<vmem>>, vector<1x1x8x8xf32>
    %91 = vector.shape_cast %90 : vector<1x1x8x8xf32> to vector<8x8xf32>
    %c0_64 = arith.constant 0 : index
    %c0_65 = arith.constant 0 : index
    %c0_66 = arith.constant 0 : index
    %92 = vector.load %arg4[%c0_64, %c0_65, %c0_66] : memref<1x8x16xf32, #tpu.memory_space<vmem>>, vector<1x8x1xf32>
    %93 = vector.shape_cast %92 : vector<1x8x1xf32> to vector<8x1xf32>
    %94 = vector.broadcast %93 : vector<8x1xf32> to vector<8x8xf32>
    %95 = arith.mulf %94, %85 : vector<8x8xf32>
    %c0_67 = arith.constant 0 : index
    %c0_68 = arith.constant 0 : index
    %c1_69 = arith.constant 1 : index
    %96 = vector.load %arg4[%c0_67, %c0_68, %c1_69] : memref<1x8x16xf32, #tpu.memory_space<vmem>>, vector<1x8x1xf32>
    %97 = vector.shape_cast %96 : vector<1x8x1xf32> to vector<8x1xf32>
    %98 = vector.broadcast %97 : vector<8x1xf32> to vector<8x8xf32>
    %99 = arith.mulf %98, %87 : vector<8x8xf32>
    %100 = arith.addf %95, %99 : vector<8x8xf32>
    %c0_70 = arith.constant 0 : index
    %c0_71 = arith.constant 0 : index
    %c2_72 = arith.constant 2 : index
    %101 = vector.load %arg4[%c0_70, %c0_71, %c2_72] : memref<1x8x16xf32, #tpu.memory_space<vmem>>, vector<1x8x1xf32>
    %102 = vector.shape_cast %101 : vector<1x8x1xf32> to vector<8x1xf32>
    %103 = vector.broadcast %102 : vector<8x1xf32> to vector<8x8xf32>
    %104 = arith.mulf %103, %89 : vector<8x8xf32>
    %105 = arith.addf %100, %104 : vector<8x8xf32>
    %c0_73 = arith.constant 0 : index
    %c0_74 = arith.constant 0 : index
    %c3_75 = arith.constant 3 : index
    %106 = vector.load %arg4[%c0_73, %c0_74, %c3_75] : memref<1x8x16xf32, #tpu.memory_space<vmem>>, vector<1x8x1xf32>
    %107 = vector.shape_cast %106 : vector<1x8x1xf32> to vector<8x1xf32>
    %108 = vector.broadcast %107 : vector<8x1xf32> to vector<8x8xf32>
    %109 = arith.mulf %108, %91 : vector<8x8xf32>
    %110 = arith.addf %105, %109 : vector<8x8xf32>
    %c0_76 = arith.constant 0 : index
    %c0_77 = arith.constant 0 : index
    %c4_78 = arith.constant 4 : index
    %111 = vector.load %arg4[%c0_76, %c0_77, %c4_78] : memref<1x8x16xf32, #tpu.memory_space<vmem>>, vector<1x8x1xf32>
    %112 = vector.shape_cast %111 : vector<1x8x1xf32> to vector<8x1xf32>
    %113 = vector.broadcast %112 : vector<8x1xf32> to vector<8x8xf32>
    %114 = arith.mulf %113, %85 : vector<8x8xf32>
    %c0_79 = arith.constant 0 : index
    %c0_80 = arith.constant 0 : index
    %c5_81 = arith.constant 5 : index
    %115 = vector.load %arg4[%c0_79, %c0_80, %c5_81] : memref<1x8x16xf32, #tpu.memory_space<vmem>>, vector<1x8x1xf32>
    %116 = vector.shape_cast %115 : vector<1x8x1xf32> to vector<8x1xf32>
    %117 = vector.broadcast %116 : vector<8x1xf32> to vector<8x8xf32>
    %118 = arith.mulf %117, %87 : vector<8x8xf32>
    %119 = arith.addf %114, %118 : vector<8x8xf32>
    %c0_82 = arith.constant 0 : index
    %c0_83 = arith.constant 0 : index
    %c6_84 = arith.constant 6 : index
    %120 = vector.load %arg4[%c0_82, %c0_83, %c6_84] : memref<1x8x16xf32, #tpu.memory_space<vmem>>, vector<1x8x1xf32>
    %121 = vector.shape_cast %120 : vector<1x8x1xf32> to vector<8x1xf32>
    %122 = vector.broadcast %121 : vector<8x1xf32> to vector<8x8xf32>
    %123 = arith.mulf %122, %89 : vector<8x8xf32>
    %124 = arith.addf %119, %123 : vector<8x8xf32>
    %c0_85 = arith.constant 0 : index
    %c0_86 = arith.constant 0 : index
    %c7_87 = arith.constant 7 : index
    %125 = vector.load %arg4[%c0_85, %c0_86, %c7_87] : memref<1x8x16xf32, #tpu.memory_space<vmem>>, vector<1x8x1xf32>
    %126 = vector.shape_cast %125 : vector<1x8x1xf32> to vector<8x1xf32>
    %127 = vector.broadcast %126 : vector<8x1xf32> to vector<8x8xf32>
    %128 = arith.mulf %127, %91 : vector<8x8xf32>
    %129 = arith.addf %124, %128 : vector<8x8xf32>
    %c0_88 = arith.constant 0 : index
    %c0_89 = arith.constant 0 : index
    %c8_90 = arith.constant 8 : index
    %130 = vector.load %arg4[%c0_88, %c0_89, %c8_90] : memref<1x8x16xf32, #tpu.memory_space<vmem>>, vector<1x8x1xf32>
    %131 = vector.shape_cast %130 : vector<1x8x1xf32> to vector<8x1xf32>
    %132 = vector.broadcast %131 : vector<8x1xf32> to vector<8x8xf32>
    %133 = arith.mulf %132, %85 : vector<8x8xf32>
    %c0_91 = arith.constant 0 : index
    %c0_92 = arith.constant 0 : index
    %c9_93 = arith.constant 9 : index
    %134 = vector.load %arg4[%c0_91, %c0_92, %c9_93] : memref<1x8x16xf32, #tpu.memory_space<vmem>>, vector<1x8x1xf32>
    %135 = vector.shape_cast %134 : vector<1x8x1xf32> to vector<8x1xf32>
    %136 = vector.broadcast %135 : vector<8x1xf32> to vector<8x8xf32>
    %137 = arith.mulf %136, %87 : vector<8x8xf32>
    %138 = arith.addf %133, %137 : vector<8x8xf32>
    %c0_94 = arith.constant 0 : index
    %c0_95 = arith.constant 0 : index
    %c10_96 = arith.constant 10 : index
    %139 = vector.load %arg4[%c0_94, %c0_95, %c10_96] : memref<1x8x16xf32, #tpu.memory_space<vmem>>, vector<1x8x1xf32>
    %140 = vector.shape_cast %139 : vector<1x8x1xf32> to vector<8x1xf32>
    %141 = vector.broadcast %140 : vector<8x1xf32> to vector<8x8xf32>
    %142 = arith.mulf %141, %89 : vector<8x8xf32>
    %143 = arith.addf %138, %142 : vector<8x8xf32>
    %c0_97 = arith.constant 0 : index
    %c0_98 = arith.constant 0 : index
    %c11_99 = arith.constant 11 : index
    %144 = vector.load %arg4[%c0_97, %c0_98, %c11_99] : memref<1x8x16xf32, #tpu.memory_space<vmem>>, vector<1x8x1xf32>
    %145 = vector.shape_cast %144 : vector<1x8x1xf32> to vector<8x1xf32>
    %146 = vector.broadcast %145 : vector<8x1xf32> to vector<8x8xf32>
    %147 = arith.mulf %146, %91 : vector<8x8xf32>
    %148 = arith.addf %143, %147 : vector<8x8xf32>
    %c0_100 = arith.constant 0 : index
    %c0_101 = arith.constant 0 : index
    %c12_102 = arith.constant 12 : index
    %149 = vector.load %arg4[%c0_100, %c0_101, %c12_102] : memref<1x8x16xf32, #tpu.memory_space<vmem>>, vector<1x8x1xf32>
    %150 = vector.shape_cast %149 : vector<1x8x1xf32> to vector<8x1xf32>
    %151 = vector.broadcast %150 : vector<8x1xf32> to vector<8x8xf32>
    %152 = arith.mulf %151, %85 : vector<8x8xf32>
    %c0_103 = arith.constant 0 : index
    %c0_104 = arith.constant 0 : index
    %c13_105 = arith.constant 13 : index
    %153 = vector.load %arg4[%c0_103, %c0_104, %c13_105] : memref<1x8x16xf32, #tpu.memory_space<vmem>>, vector<1x8x1xf32>
    %154 = vector.shape_cast %153 : vector<1x8x1xf32> to vector<8x1xf32>
    %155 = vector.broadcast %154 : vector<8x1xf32> to vector<8x8xf32>
    %156 = arith.mulf %155, %87 : vector<8x8xf32>
    %157 = arith.addf %152, %156 : vector<8x8xf32>
    %c0_106 = arith.constant 0 : index
    %c0_107 = arith.constant 0 : index
    %c14_108 = arith.constant 14 : index
    %158 = vector.load %arg4[%c0_106, %c0_107, %c14_108] : memref<1x8x16xf32, #tpu.memory_space<vmem>>, vector<1x8x1xf32>
    %159 = vector.shape_cast %158 : vector<1x8x1xf32> to vector<8x1xf32>
    %160 = vector.broadcast %159 : vector<8x1xf32> to vector<8x8xf32>
    %161 = arith.mulf %160, %89 : vector<8x8xf32>
    %162 = arith.addf %157, %161 : vector<8x8xf32>
    %c0_109 = arith.constant 0 : index
    %c0_110 = arith.constant 0 : index
    %c15_111 = arith.constant 15 : index
    %163 = vector.load %arg4[%c0_109, %c0_110, %c15_111] : memref<1x8x16xf32, #tpu.memory_space<vmem>>, vector<1x8x1xf32>
    %164 = vector.shape_cast %163 : vector<1x8x1xf32> to vector<8x1xf32>
    %165 = vector.broadcast %164 : vector<8x1xf32> to vector<8x8xf32>
    %166 = arith.mulf %165, %91 : vector<8x8xf32>
    %167 = arith.addf %162, %166 : vector<8x8xf32>
    %cst = arith.constant dense<0.000000e+00> : vector<8x8xf32>
    %168 = tpu.matmul %26, %110, %cst {dimension_numbers = #tpu.dot_dimension_numbers<[1], [1], [0], [0], [0, 0, 1, 0], [], []>, precision = #tpu.contract_precision<fp32>} : vector<8x8xf32>, vector<8x8xf32>, vector<8x8xf32> -> vector<8x8xf32>
    %cst_112 = arith.constant dense<0.000000e+00> : vector<8x8xf32>
    %169 = tpu.matmul %45, %129, %cst_112 {dimension_numbers = #tpu.dot_dimension_numbers<[1], [1], [0], [0], [0, 0, 1, 0], [], []>, precision = #tpu.contract_precision<fp32>} : vector<8x8xf32>, vector<8x8xf32>, vector<8x8xf32> -> vector<8x8xf32>
    %170 = arith.addf %168, %169 : vector<8x8xf32>
    %cst_113 = arith.constant dense<0.000000e+00> : vector<8x8xf32>
    %171 = tpu.matmul %64, %148, %cst_113 {dimension_numbers = #tpu.dot_dimension_numbers<[1], [1], [0], [0], [0, 0, 1, 0], [], []>, precision = #tpu.contract_precision<fp32>} : vector<8x8xf32>, vector<8x8xf32>, vector<8x8xf32> -> vector<8x8xf32>
    %172 = arith.addf %170, %171 : vector<8x8xf32>
    %cst_114 = arith.constant dense<0.000000e+00> : vector<8x8xf32>
    %173 = tpu.matmul %83, %167, %cst_114 {dimension_numbers = #tpu.dot_dimension_numbers<[1], [1], [0], [0], [0, 0, 1, 0], [], []>, precision = #tpu.contract_precision<fp32>} : vector<8x8xf32>, vector<8x8xf32>, vector<8x8xf32> -> vector<8x8xf32>
    %174 = arith.addf %172, %173 : vector<8x8xf32>
    %cst_115 = arith.constant dense<0xFF800000> : vector<8xf32>
    %175 = vector.multi_reduction <maximumf>, %174, %cst_115 [1] : vector<8x8xf32> to vector<8xf32>
    %176 = vector.shape_cast %175 : vector<8xf32> to vector<8x1xf32>
    %177 = vector.broadcast %176 : vector<8x1xf32> to vector<8x8xf32>
    %178 = arith.subf %174, %177 : vector<8x8xf32>
    %179 = math.exp %178 : vector<8x8xf32>
    %cst_116 = arith.constant dense<0.000000e+00> : vector<8xf32>
    %180 = vector.multi_reduction <add>, %179, %cst_116 [1] : vector<8x8xf32> to vector<8xf32>
    %181 = vector.shape_cast %180 : vector<8xf32> to vector<8x1xf32>
    %182 = tpu.reciprocal %181 {approx = true} : vector<8x1xf32> -> vector<8x1xf32>
    %183 = vector.broadcast %182 : vector<8x1xf32> to vector<8x8xf32>
    %184 = arith.mulf %179, %183 : vector<8x8xf32>
    %c0_117 = arith.constant 0 : index
    %c0_118 = arith.constant 0 : index
    %c0_119 = arith.constant 0 : index
    %c0_120 = arith.constant 0 : index
    %185 = vector.load %arg13[%c0_117, %c0_118, %c0_119, %c0_120] : memref<1x1x8x32xf32, #tpu.memory_space<vmem>>, vector<1x1x8x32xf32>
    %186 = vector.shape_cast %185 : vector<1x1x8x32xf32> to vector<8x32xf32>
    %cst_121 = arith.constant dense<0.000000e+00> : vector<8x32xf32>
    %187 = tpu.matmul %184, %186, %cst_121 {dimension_numbers = #tpu.dot_dimension_numbers<[1], [0], [0], [1], [0, 0, 1, 1], [], []>, precision = #tpu.contract_precision<fp32>} : vector<8x8xf32>, vector<8x32xf32>, vector<8x32xf32> -> vector<8x32xf32>
    %c0_122 = arith.constant 0 : index
    %c0_123 = arith.constant 0 : index
    %c0_124 = arith.constant 0 : index
    %c0_125 = arith.constant 0 : index
    %188 = vector.load %arg14[%c0_122, %c0_123, %c0_124, %c0_125] : memref<1x1x8x32xf32, #tpu.memory_space<vmem>>, vector<1x1x8x32xf32>
    %189 = vector.shape_cast %188 : vector<1x1x8x32xf32> to vector<8x32xf32>
    %190 = vector.shape_cast %187 : vector<8x32xf32> to vector<1x1x8x32xf32>
    tpu.vector_store %arg14[%c0_122, %c0_123, %c0_124, %c0_125], %190 {strides = array<i32>} : memref<1x1x8x32xf32, #tpu.memory_space<vmem>>, vector<1x1x8x32xf32>,
    %c0_126 = arith.constant 0 : index
    %c0_127 = arith.constant 0 : index
    %c0_128 = arith.constant 0 : index
    %c0_129 = arith.constant 0 : index
    %191 = vector.load %arg15[%c0_126, %c0_127, %c0_128, %c0_129] : memref<1x1x8x8xf32, #tpu.memory_space<vmem>>, vector<1x1x8x8xf32>
    %192 = vector.shape_cast %191 : vector<1x1x8x8xf32> to vector<8x8xf32>
    %193 = vector.shape_cast %184 : vector<8x8xf32> to vector<1x1x8x8xf32>
    tpu.vector_store %arg15[%c0_126, %c0_127, %c0_128, %c0_129], %193 {strides = array<i32>} : memref<1x1x8x8xf32, #tpu.memory_space<vmem>>, vector<1x1x8x8xf32>,
    return
  }
  func.func @transform_0(%arg0: i32, %arg1: i32, %arg2: i32) -> (i32, i32, i32) {
    %c0_i32 = arith.constant 0 : i32
    %c0_i32_0 = arith.constant 0 : i32
    return %arg0, %arg2, %c0_i32 : i32, i32, i32
  }
  func.func @transform_1(%arg0: i32, %arg1: i32, %arg2: i32) -> (i32, i32, i32) {
    %c0_i32 = arith.constant 0 : i32
    %c0_i32_0 = arith.constant 0 : i32
    %c0_i32_1 = arith.constant 0 : i32
    return %arg0, %c0_i32, %c0_i32_0 : i32, i32, i32
  }
  func.func @transform_2(%arg0: i32, %arg1: i32, %arg2: i32) -> (i32, i32, i32, i32) {
    %c0_i32 = arith.constant 0 : i32
    %c0_i32_0 = arith.constant 0 : i32
    return %arg0, %arg1, %arg2, %c0_i32 : i32, i32, i32, i32
  }
  func.func @transform_3(%arg0: i32, %arg1: i32, %arg2: i32) -> (i32, i32, i32, i32) {
    %c0_i32 = arith.constant 0 : i32
    %c0_i32_0 = arith.constant 0 : i32
    return %arg0, %arg1, %arg2, %c0_i32 : i32, i32, i32, i32
  }
  func.func @transform_4(%arg0: i32, %arg1: i32, %arg2: i32) -> (i32, i32, i32, i32) {
    %c0_i32 = arith.constant 0 : i32
    %c0_i32_0 = arith.constant 0 : i32
    return %arg0, %arg1, %arg2, %c0_i32 : i32, i32, i32, i32
  }
  func.func @transform_5(%arg0: i32, %arg1: i32, %arg2: i32) -> (i32, i32, i32, i32) {
    %c0_i32 = arith.constant 0 : i32
    %c0_i32_0 = arith.constant 0 : i32
    return %arg0, %arg1, %arg2, %c0_i32 : i32, i32, i32, i32
  }
  func.func @transform_6(%arg0: i32, %arg1: i32, %arg2: i32) -> (i32, i32, i32, i32) {
    %c0_i32 = arith.constant 0 : i32
    %c0_i32_0 = arith.constant 0 : i32
    %c0_i32_1 = arith.constant 0 : i32
    return %arg0, %arg1, %c0_i32, %c0_i32_0 : i32, i32, i32, i32
  }
  func.func @transform_7(%arg0: i32, %arg1: i32, %arg2: i32) -> (i32, i32, i32, i32) {
    %c0_i32 = arith.constant 0 : i32
    %c0_i32_0 = arith.constant 0 : i32
    %c0_i32_1 = arith.constant 0 : i32
    return %arg0, %arg1, %c0_i32, %c0_i32_0 : i32, i32, i32, i32
  }
  func.func @transform_8(%arg0: i32, %arg1: i32, %arg2: i32) -> (i32, i32, i32, i32) {
    %c0_i32 = arith.constant 0 : i32
    %c0_i32_0 = arith.constant 0 : i32
    %c0_i32_1 = arith.constant 0 : i32
    return %arg0, %arg1, %c0_i32, %c0_i32_0 : i32, i32, i32, i32
  }
  func.func @transform_9(%arg0: i32, %arg1: i32, %arg2: i32) -> (i32, i32, i32, i32) {
    %c0_i32 = arith.constant 0 : i32
    %c0_i32_0 = arith.constant 0 : i32
    %c0_i32_1 = arith.constant 0 : i32
    return %arg0, %arg1, %c0_i32, %c0_i32_0 : i32, i32, i32, i32
  }
  func.func @transform_10(%arg0: i32, %arg1: i32, %arg2: i32) -> (i32, i32, i32, i32) {
    %c0_i32 = arith.constant 0 : i32
    %c0_i32_0 = arith.constant 0 : i32
    %c0_i32_1 = arith.constant 0 : i32
    return %arg0, %arg1, %c0_i32, %c0_i32_0 : i32, i32, i32, i32
  }
  func.func @transform_11(%arg0: i32, %arg1: i32, %arg2: i32) -> (i32, i32, i32, i32) {
    %c0_i32 = arith.constant 0 : i32
    %c0_i32_0 = arith.constant 0 : i32
    return %arg0, %arg1, %arg2, %c0_i32 : i32, i32, i32, i32
  }
  func.func @transform_12(%arg0: i32, %arg1: i32, %arg2: i32) -> (i32, i32, i32, i32) {
    %c0_i32 = arith.constant 0 : i32
    %c0_i32_0 = arith.constant 0 : i32
    return %arg0, %arg1, %arg2, %c0_i32 : i32, i32, i32, i32
  }
}

</mosaic_0001>

<llo_original>
// kernel: tpu_custom_call.1
$region0: #{tpu_custom_call.1}
  #allocation0 [shape = 'u32[]', space=smem, size = 0x4, offset = 0x4, fixed_abs, tag = 'smem constant byte address 0x4 - core index']
  #allocation1 [shape = 'u32[72,128]{1,0:T(1,128)}', space=vmem, size = 0x9000, scoped, tag = 'internal scratch']
  %s0 = inlined_call_operand.hbm [shape: f32[2,8,16], index: 0, kind: input, shape index: {}]
  %s1 = inlined_call_operand.hbm [shape: f32[2,8,16], index: 1, kind: input, shape index: {}]
  %s2 = inlined_call_operand.hbm [shape: f32[2,2,8,8], index: 2, kind: input, shape index: {}]
  %s3 = inlined_call_operand.hbm [shape: f32[2,2,8,8], index: 3, kind: input, shape index: {}]
  %s4 = inlined_call_operand.hbm [shape: f32[2,2,8,8], index: 4, kind: input, shape index: {}]
  %s5 = inlined_call_operand.hbm [shape: f32[2,2,8,8], index: 5, kind: input, shape index: {}]
  %s6 = inlined_call_operand.hbm [shape: f32[2,2,8,8], index: 6, kind: input, shape index: {}]
  %s7 = inlined_call_operand.hbm [shape: f32[2,2,8,8], index: 7, kind: input, shape index: {}]
  %s8 = inlined_call_operand.hbm [shape: f32[2,2,8,8], index: 8, kind: input, shape index: {}]
  %s9 = inlined_call_operand.hbm [shape: f32[2,2,8,8], index: 9, kind: input, shape index: {}]
  %s10 = inlined_call_operand.hbm [shape: f32[2,2,8,32], index: 10, kind: input, shape index: {}]
  %s11 = inlined_call_operand.hbm [shape: f32[2,2,8,32], index: 11, kind: output, shape index: {0}]
  %s12 = inlined_call_operand.hbm [shape: f32[2,2,8,8], index: 12, kind: output, shape index: {1}]
  %13 = xla_tuple %s11, %s12
  %s14 = sld [smem:[#allocation0]]
  $region129: #{tpu_custom_call.1} parent=0
    _
  %s16 = ssub.s32 1, %s14
  %s17 = scalar_select 0, %s16, %s14
  $region1: #{tpu_custom_call.1} parent=0
    #allocation2 [shape = 'u8[8192]{0}', space=vmem, size = 0x2000, scoped, tag = 'input window, operand 0']
    #allocation3 [shape = 's32[2]{0}', space=sflag, size = 0x8, scoped, tag = 'scoped memory for tpu_custom_call.1']
    #allocation4 [shape = 's32[2]{0}', space=sflag, size = 0x8, scoped, tag = 'scoped memory for tpu_custom_call.1']
    #allocation5 [shape = 'u8[8192]{0}', space=vmem, size = 0x2000, scoped, tag = 'input window, operand 1']
    #allocation6 [shape = 's32[2]{0}', space=sflag, size = 0x8, scoped, tag = 'scoped memory for tpu_custom_call.1']
    #allocation7 [shape = 'u8[8192]{0}', space=vmem, size = 0x2000, scoped, tag = 'input window, operand 2']
    #allocation8 [shape = 'u8[8192]{0}', space=vmem, size = 0x2000, scoped, tag = 'input window, operand 3']
    #allocation9 [shape = 's32[2]{0}', space=sflag, size = 0x8, scoped, tag = 'scoped memory for tpu_custom_call.1']
    #allocation10 [shape = 'u8[8192]{0}', space=vmem, size = 0x2000, scoped, tag = 'input window, operand 4']
    #allocation11 [shape = 'u8[8192]{0}', space=vmem, size = 0x2000, scoped, tag = 'input window, operand 5']
    #allocation12 [shape = 's32[2]{0}', space=sflag, size = 0x8, scoped, tag = 'scoped memory for tpu_custom_call.1']
    #allocation13 [shape = 'u8[8192]{0}', space=vmem, size = 0x2000, scoped, tag = 'input window, operand 6']
    #allocation14 [shape = 'u8[8192]{0}', space=vmem, size = 0x2000, scoped, tag = 'input window, operand 7']
    #allocation15 [shape = 's32[2]{0}', space=sflag, size = 0x8, scoped, tag = 'scoped memory for tpu_custom_call.1']
    #allocation16 [shape = 'u8[8192]{0}', space=vmem, size = 0x2000, scoped, tag = 'input window, operand 8']
    #allocation17 [shape = 'u8[8192]{0}', space=vmem, size = 0x2000, scoped, tag = 'input window, operand 9']
    #allocation18 [shape = 's32[2]{0}', space=sflag, size = 0x8, scoped, tag = 'scoped memory for tpu_custom_call.1']
    #allocation19 [shape = 'u8[8192]{0}', space=vmem, size = 0x2000, scoped, tag = 'input window, operand 10']
    #allocation20 [shape = 'u8[8192]{0}', space=vmem, size = 0x2000, scoped, tag = 'output window, operand 0']
    #allocation21 [shape = 'u8[8192]{0}', space=vmem, size = 0x2000, scoped, tag = 'output window, operand 1']
    #allocation22 [shape = 's32[2]{0}', space=sflag, size = 0x8, scoped, tag = 'scoped memory for tpu_custom_call.1']
    %18 = vsyncpa [#allocation3], 0
    %s19 = scalar_lea.sflag [#allocation3], 1
    %20 = vsyncpa %s19, 0
    %21 = vsyncpa [#allocation6], 0
    %s22 = scalar_lea.sflag [#allocation6], 1
    %23 = vsyncpa %s22, 0
    %24 = vsyncpa [#allocation9], 0
    %s25 = scalar_lea.sflag [#allocation9], 1
    %26 = vsyncpa %s25, 0
    %27 = vsyncpa [#allocation12], 0
    %s28 = scalar_lea.sflag [#allocation12], 1
    %29 = vsyncpa %s28, 0
    %30 = vsyncpa [#allocation15], 0
    %s31 = scalar_lea.sflag [#allocation15], 1
    %32 = vsyncpa %s31, 0
    %33 = vsyncpa [#allocation18], 0
    %s34 = scalar_lea.sflag [#allocation18], 1
    %35 = vsyncpa %s34, 0
    %36 = vsyncpa [#allocation4], 0
    %s37 = scalar_lea.sflag [#allocation4], 1
    %38 = vsyncpa %s37, 0
    %39 = vsyncpa [#allocation22], 0
    %s40 = scalar_lea.sflag [#allocation22], 1
    %41 = vsyncpa %s40, 0
    loop: start=0, step=1, limit=6
    $region2: #{tpu_custom_call.1} parent=1 // loop_pre_header
      _
    $region3: #{tpu_custom_call.1} parent=1 // loop_header
      %s43 = sphi 0, %s47
      %p44 = scmp.ge.s32.totalorder %s43, 6
      %s50 = sphi 0, %s69
      %s51 = sphi 0, %s65
      %s52 = sphi 0, %s61
      %s53 = sphi 0, %s50
      %s54 = sphi 0, %s51
      %s55 = sphi 0, %s52
      %s56 = sphi 0, %s53
      %s57 = sphi 0, %s54
      %s58 = sphi 0, %s55
      %s74 = sphi 0, %s76
      %s77 = sphi 0, %s74
      %s78 = sphi 0, %s77
      %s94 = sphi 0, %s78
      %s100 = sphi 0, %s102
      %s103 = sphi 0, %s100
      %s104 = sphi 0, %s103
      %s120 = sphi 0, %s104
      %s130 = sphi 0, %s132
      %s133 = sphi 0, %s130
      %s134 = sphi 0, %s133
      %s150 = sphi 0, %s134
      %s160 = sphi 0, %s162
      %s163 = sphi 0, %s160
      %s164 = sphi 0, %s163
      %s180 = sphi 0, %s164
      %s190 = sphi 0, %s192
      %s193 = sphi 0, %s190
      %s194 = sphi 0, %s193
      %s210 = sphi 0, %s194
      %s220 = sphi 0, %s222
      %s223 = sphi 0, %s220
      %s224 = sphi 0, %s223
      %s240 = sphi 0, %s224
      %s248 = sphi 0, %s250
      %s251 = sphi 0, %s248
      %s252 = sphi 0, %s251
      %s268 = sphi 0, %s252
      %s276 = sphi 0, %s278
      %s279 = sphi 0, %s276
      %s280 = sphi 0, %s279
      %s296 = sphi 0, %s280
      %s304 = sphi 0, %s306
      %s307 = sphi 0, %s304
      %s308 = sphi 0, %s307
      %s324 = sphi 0, %s308
      %s332 = sphi 0, %s334
      %s335 = sphi 0, %s332
      %s336 = sphi 0, %s335
      %s352 = sphi 0, %s336
      %s360 = sphi 0, %s362
      %s363 = sphi 0, %s360
      %s364 = sphi 0, %s363
      %s380 = sphi 0, %s364
      %s390 = sphi 0, %s392
      %s393 = sphi 0, %s390
      %s394 = sphi 0, %s393
      %s410 = sphi 0, %s394
      %s420 = sphi 0, %s422
      %s423 = sphi 0, %s420
      %s424 = sphi 0, %s423
      %s440 = sphi 0, %s424
    $region4: #{tpu_custom_call.1} parent=1 // loop_header_branch
      %46 = sbr.rel (%p44) target = $region8
    $region5: #{tpu_custom_call.1} parent=1 // loop_body
      %s48 = ssub.s32 %s43, 1
      %s49 = ssub.s32 %s43, 2
      %s59 = sadd.s32 1, %s52
      %p60 = scmp.ge.s32.totalorder %s59, 1
      %s61 = scalar_select %p60, 0, %s59
      %s62 = sadd.s32 1, %s51
      %s63 = scalar_select %p60, %s62, %s51
      %p64 = scmp.ge.s32.totalorder %s63, 2
      %s65 = scalar_select %p64, 0, %s63
      %s66 = sadd.s32 1, %s50
      %s67 = scalar_select %p64, %s66, %s50
      %p68 = scmp.ge.s32.totalorder %s67, 2
      %s69 = scalar_select %p68, 0, %s67
      %s70 = ssub.s32 %s50, %s69
      %s71 = ssub.s32 %s52, %s61
      %s72 = sor.u32 %s70, %s71
      %p73 = scmp.eq.s32.totalorder %s72, 0
      %s75 = sadd.s32 %s74, 1
      %s76 = scalar_select %p73, %s74, %s75
      %p79 = pneg %p73
      %p80 = scmp.eq.s32.totalorder %s43, 3
      %p81 = por %p79, %p80
      %p82 = scmp.ne.s32.totalorder %s74, %s77
      %p83 = scmp.eq.s32.totalorder %s43, 0
      %p84 = por %p82, %p83
      %p85 = scmp.ne.s32.totalorder %s74, %s77
      %p86 = scmp.eq.s32.totalorder %s48, 3
      %p87 = por %p85, %p86
      %p88 = scmp.ne.s32.totalorder %s77, %s78
      %p89 = scmp.eq.s32.totalorder %s48, 0
      %p90 = por %p88, %p89
      %p91 = scmp.ne.s32.totalorder %s77, %s78
      %p92 = scmp.eq.s32.totalorder %s49, 3
      %p93 = por %p91, %p92
      %p95 = scmp.ne.s32.totalorder %s78, %s94
      %p96 = scmp.eq.s32.totalorder %s49, 0
      %p97 = por %p95, %p96
      %s98 = ssub.s32 %s50, %s69
      %p99 = scmp.eq.s32.totalorder %s98, 0
      %s101 = sadd.s32 %s100, 1
      %s102 = scalar_select %p99, %s100, %s101
      %p105 = pneg %p99
      %p106 = scmp.eq.s32.totalorder %s43, 3
      %p107 = por %p105, %p106
      %p108 = scmp.ne.s32.totalorder %s100, %s103
      %p109 = scmp.eq.s32.totalorder %s43, 0
      %p110 = por %p108, %p109
      %p111 = scmp.ne.s32.totalorder %s100, %s103
      %p112 = scmp.eq.s32.totalorder %s48, 3
      %p113 = por %p111, %p112
      %p114 = scmp.ne.s32.totalorder %s103, %s104
      %p115 = scmp.eq.s32.totalorder %s48, 0
      %p116 = por %p114, %p115
      %p117 = scmp.ne.s32.totalorder %s103, %s104
      %p118 = scmp.eq.s32.totalorder %s49, 3
      %p119 = por %p117, %p118
      %p121 = scmp.ne.s32.totalorder %s104, %s120
      %p122 = scmp.eq.s32.totalorder %s49, 0
      %p123 = por %p121, %p122
      %s124 = ssub.s32 %s50, %s69
      %s125 = ssub.s32 %s51, %s65
      %s126 = sor.u32 %s124, %s125
      %s127 = ssub.s32 %s52, %s61
      %s128 = sor.u32 %s126, %s127
      %p129 = scmp.eq.s32.totalorder %s128, 0
      %s131 = sadd.s32 %s130, 1
      %s132 = scalar_select %p129, %s130, %s131
      %p135 = pneg %p129
      %p136 = scmp.eq.s32.totalorder %s43, 3
      %p137 = por %p135, %p136
      %p138 = scmp.ne.s32.totalorder %s130, %s133
      %p139 = scmp.eq.s32.totalorder %s43, 0
      %p140 = por %p138, %p139
      %p141 = scmp.ne.s32.totalorder %s130, %s133
      %p142 = scmp.eq.s32.totalorder %s48, 3
      %p143 = por %p141, %p142
      %p144 = scmp.ne.s32.totalorder %s133, %s134
      %p145 = scmp.eq.s32.totalorder %s48, 0
      %p146 = por %p144, %p145
      %p147 = scmp.ne.s32.totalorder %s133, %s134
      %p148 = scmp.eq.s32.totalorder %s49, 3
      %p149 = por %p147, %p148
      %p151 = scmp.ne.s32.totalorder %s134, %s150
      %p152 = scmp.eq.s32.totalorder %s49, 0
      %p153 = por %p151, %p152
      %s154 = ssub.s32 %s50, %s69
      %s155 = ssub.s32 %s51, %s65
      %s156 = sor.u32 %s154, %s155
      %s157 = ssub.s32 %s52, %s61
      %s158 = sor.u32 %s156, %s157
      %p159 = scmp.eq.s32.totalorder %s158, 0
      %s161 = sadd.s32 %s160, 1
      %s162 = scalar_select %p159, %s160, %s161
      %p165 = pneg %p159
      %p166 = scmp.eq.s32.totalorder %s43, 3
      %p167 = por %p165, %p166
      %p168 = scmp.ne.s32.totalorder %s160, %s163
      %p169 = scmp.eq.s32.totalorder %s43, 0
      %p170 = por %p168, %p169
      %p171 = scmp.ne.s32.totalorder %s160, %s163
      %p172 = scmp.eq.s32.totalorder %s48, 3
      %p173 = por %p171, %p172
      %p174 = scmp.ne.s32.totalorder %s163, %s164
      %p175 = scmp.eq.s32.totalorder %s48, 0
      %p176 = por %p174, %p175
      %p177 = scmp.ne.s32.totalorder %s163, %s164
      %p178 = scmp.eq.s32.totalorder %s49, 3
      %p179 = por %p177, %p178
      %p181 = scmp.ne.s32.totalorder %s164, %s180
      %p182 = scmp.eq.s32.totalorder %s49, 0
      %p183 = por %p181, %p182
      %s184 = ssub.s32 %s50, %s69
      %s185 = ssub.s32 %s51, %s65
      %s186 = sor.u32 %s184, %s185
      %s187 = ssub.s32 %s52, %s61
      %s188 = sor.u32 %s186, %s187
      %p189 = scmp.eq.s32.totalorder %s188, 0
      %s191 = sadd.s32 %s190, 1
      %s192 = scalar_select %p189, %s190, %s191
      %p195 = pneg %p189
      %p196 = scmp.eq.s32.totalorder %s43, 3
      %p197 = por %p195, %p196
      %p198 = scmp.ne.s32.totalorder %s190, %s193
      %p199 = scmp.eq.s32.totalorder %s43, 0
      %p200 = por %p198, %p199
      %p201 = scmp.ne.s32.totalorder %s190, %s193
      %p202 = scmp.eq.s32.totalorder %s48, 3
      %p203 = por %p201, %p202
      %p204 = scmp.ne.s32.totalorder %s193, %s194
      %p205 = scmp.eq.s32.totalorder %s48, 0
      %p206 = por %p204, %p205
      %p207 = scmp.ne.s32.totalorder %s193, %s194
      %p208 = scmp.eq.s32.totalorder %s49, 3
      %p209 = por %p207, %p208
      %p211 = scmp.ne.s32.totalorder %s194, %s210
      %p212 = scmp.eq.s32.totalorder %s49, 0
      %p213 = por %p211, %p212
      %s214 = ssub.s32 %s50, %s69
      %s215 = ssub.s32 %s51, %s65
      %s216 = sor.u32 %s214, %s215
      %s217 = ssub.s32 %s52, %s61
      %s218 = sor.u32 %s216, %s217
      %p219 = scmp.eq.s32.totalorder %s218, 0
      %s221 = sadd.s32 %s220, 1
      %s222 = scalar_select %p219, %s220, %s221
      %p225 = pneg %p219
      %p226 = scmp.eq.s32.totalorder %s43, 3
      %p227 = por %p225, %p226
      %p228 = scmp.ne.s32.totalorder %s220, %s223
      %p229 = scmp.eq.s32.totalorder %s43, 0
      %p230 = por %p228, %p229
      %p231 = scmp.ne.s32.totalorder %s220, %s223
      %p232 = scmp.eq.s32.totalorder %s48, 3
      %p233 = por %p231, %p232
      %p234 = scmp.ne.s32.totalorder %s223, %s224
      %p235 = scmp.eq.s32.totalorder %s48, 0
      %p236 = por %p234, %p235
      %p237 = scmp.ne.s32.totalorder %s223, %s224
      %p238 = scmp.eq.s32.totalorder %s49, 3
      %p239 = por %p237, %p238
      %p241 = scmp.ne.s32.totalorder %s224, %s240
      %p242 = scmp.eq.s32.totalorder %s49, 0
      %p243 = por %p241, %p242
      %s244 = ssub.s32 %s50, %s69
      %s245 = ssub.s32 %s51, %s65
      %s246 = sor.u32 %s244, %s245
      %p247 = scmp.eq.s32.totalorder %s246, 0
      %s249 = sadd.s32 %s248, 1
      %s250 = scalar_select %p247, %s248, %s249
      %p253 = pneg %p247
      %p254 = scmp.eq.s32.totalorder %s43, 3
      %p255 = por %p253, %p254
      %p256 = scmp.ne.s32.totalorder %s248, %s251
      %p257 = scmp.eq.s32.totalorder %s43, 0
      %p258 = por %p256, %p257
      %p259 = scmp.ne.s32.totalorder %s248, %s251
      %p260 = scmp.eq.s32.totalorder %s48, 3
      %p261 = por %p259, %p260
      %p262 = scmp.ne.s32.totalorder %s251, %s252
      %p263 = scmp.eq.s32.totalorder %s48, 0
      %p264 = por %p262, %p263
      %p265 = scmp.ne.s32.totalorder %s251, %s252
      %p266 = scmp.eq.s32.totalorder %s49, 3
      %p267 = por %p265, %p266
      %p269 = scmp.ne.s32.totalorder %s252, %s268
      %p270 = scmp.eq.s32.totalorder %s49, 0
      %p271 = por %p269, %p270
      %s272 = ssub.s32 %s50, %s69
      %s273 = ssub.s32 %s51, %s65
      %s274 = sor.u32 %s272, %s273
      %p275 = scmp.eq.s32.totalorder %s274, 0
      %s277 = sadd.s32 %s276, 1
      %s278 = scalar_select %p275, %s276, %s277
      %p281 = pneg %p275
      %p282 = scmp.eq.s32.totalorder %s43, 3
      %p283 = por %p281, %p282
      %p284 = scmp.ne.s32.totalorder %s276, %s279
      %p285 = scmp.eq.s32.totalorder %s43, 0
      %p286 = por %p284, %p285
      %p287 = scmp.ne.s32.totalorder %s276, %s279
      %p288 = scmp.eq.s32.totalorder %s48, 3
      %p289 = por %p287, %p288
      %p290 = scmp.ne.s32.totalorder %s279, %s280
      %p291 = scmp.eq.s32.totalorder %s48, 0
      %p292 = por %p290, %p291
      %p293 = scmp.ne.s32.totalorder %s279, %s280
      %p294 = scmp.eq.s32.totalorder %s49, 3
      %p295 = por %p293, %p294
      %p297 = scmp.ne.s32.totalorder %s280, %s296
      %p298 = scmp.eq.s32.totalorder %s49, 0
      %p299 = por %p297, %p298
      %s300 = ssub.s32 %s50, %s69
      %s301 = ssub.s32 %s51, %s65
      %s302 = sor.u32 %s300, %s301
      %p303 = scmp.eq.s32.totalorder %s302, 0
      %s305 = sadd.s32 %s304, 1
      %s306 = scalar_select %p303, %s304, %s305
      %p309 = pneg %p303
      %p310 = scmp.eq.s32.totalorder %s43, 3
      %p311 = por %p309, %p310
      %p312 = scmp.ne.s32.totalorder %s304, %s307
      %p313 = scmp.eq.s32.totalorder %s43, 0
      %p314 = por %p312, %p313
      %p315 = scmp.ne.s32.totalorder %s304, %s307
      %p316 = scmp.eq.s32.totalorder %s48, 3
      %p317 = por %p315, %p316
      %p318 = scmp.ne.s32.totalorder %s307, %s308
      %p319 = scmp.eq.s32.totalorder %s48, 0
      %p320 = por %p318, %p319
      %p321 = scmp.ne.s32.totalorder %s307, %s308
      %p322 = scmp.eq.s32.totalorder %s49, 3
      %p323 = por %p321, %p322
      %p325 = scmp.ne.s32.totalorder %s308, %s324
      %p326 = scmp.eq.s32.totalorder %s49, 0
      %p327 = por %p325, %p326
      %s328 = ssub.s32 %s50, %s69
      %s329 = ssub.s32 %s51, %s65
      %s330 = sor.u32 %s328, %s329
      %p331 = scmp.eq.s32.totalorder %s330, 0
      %s333 = sadd.s32 %s332, 1
      %s334 = scalar_select %p331, %s332, %s333
      %p337 = pneg %p331
      %p338 = scmp.eq.s32.totalorder %s43, 3
      %p339 = por %p337, %p338
      %p340 = scmp.ne.s32.totalorder %s332, %s335
      %p341 = scmp.eq.s32.totalorder %s43, 0
      %p342 = por %p340, %p341
      %p343 = scmp.ne.s32.totalorder %s332, %s335
      %p344 = scmp.eq.s32.totalorder %s48, 3
      %p345 = por %p343, %p344
      %p346 = scmp.ne.s32.totalorder %s335, %s336
      %p347 = scmp.eq.s32.totalorder %s48, 0
      %p348 = por %p346, %p347
      %p349 = scmp.ne.s32.totalorder %s335, %s336
      %p350 = scmp.eq.s32.totalorder %s49, 3
      %p351 = por %p349, %p350
      %p353 = scmp.ne.s32.totalorder %s336, %s352
      %p354 = scmp.eq.s32.totalorder %s49, 0
      %p355 = por %p353, %p354
      %s356 = ssub.s32 %s50, %s69
      %s357 = ssub.s32 %s51, %s65
      %s358 = sor.u32 %s356, %s357
      %p359 = scmp.eq.s32.totalorder %s358, 0
      %s361 = sadd.s32 %s360, 1
      %s362 = scalar_select %p359, %s360, %s361
      %p365 = pneg %p359
      %p366 = scmp.eq.s32.totalorder %s43, 3
      %p367 = por %p365, %p366
      %p368 = scmp.ne.s32.totalorder %s360, %s363
      %p369 = scmp.eq.s32.totalorder %s43, 0
      %p370 = por %p368, %p369
      %p371 = scmp.ne.s32.totalorder %s360, %s363
      %p372 = scmp.eq.s32.totalorder %s48, 3
      %p373 = por %p371, %p372
      %p374 = scmp.ne.s32.totalorder %s363, %s364
      %p375 = scmp.eq.s32.totalorder %s48, 0
      %p376 = por %p374, %p375
      %p377 = scmp.ne.s32.totalorder %s363, %s364
      %p378 = scmp.eq.s32.totalorder %s49, 3
      %p379 = por %p377, %p378
      %p381 = scmp.ne.s32.totalorder %s364, %s380
      %p382 = scmp.eq.s32.totalorder %s49, 0
      %p383 = por %p381, %p382
      %s384 = ssub.s32 %s50, %s69
      %s385 = ssub.s32 %s51, %s65
      %s386 = sor.u32 %s384, %s385
      %s387 = ssub.s32 %s52, %s61
      %s388 = sor.u32 %s386, %s387
      %p389 = scmp.eq.s32.totalorder %s388, 0
      %s391 = sadd.s32 %s390, 1
      %s392 = scalar_select %p389, %s390, %s391
      %p395 = pneg %p389
      %p396 = scmp.eq.s32.totalorder %s43, 3
      %p397 = por %p395, %p396
      %p398 = scmp.ne.s32.totalorder %s390, %s393
      %p399 = scmp.eq.s32.totalorder %s43, 0
      %p400 = por %p398, %p399
      %p401 = scmp.ne.s32.totalorder %s390, %s393
      %p402 = scmp.eq.s32.totalorder %s48, 3
      %p403 = por %p401, %p402
      %p404 = scmp.ne.s32.totalorder %s393, %s394
      %p405 = scmp.eq.s32.totalorder %s48, 0
      %p406 = por %p404, %p405
      %p407 = scmp.ne.s32.totalorder %s393, %s394
      %p408 = scmp.eq.s32.totalorder %s49, 3
      %p409 = por %p407, %p408
      %p411 = scmp.ne.s32.totalorder %s394, %s410
      %p412 = scmp.eq.s32.totalorder %s49, 0
      %p413 = por %p411, %p412
      %s414 = ssub.s32 %s50, %s69
      %s415 = ssub.s32 %s51, %s65
      %s416 = sor.u32 %s414, %s415
      %s417 = ssub.s32 %s52, %s61
      %s418 = sor.u32 %s416, %s417
      %p419 = scmp.eq.s32.totalorder %s418, 0
      %s421 = sadd.s32 %s420, 1
      %s422 = scalar_select %p419, %s420, %s421
      %p425 = pneg %p419
      %p426 = scmp.eq.s32.totalorder %s43, 3
      %p427 = por %p425, %p426
      %p428 = scmp.ne.s32.totalorder %s420, %s423
      %p429 = scmp.eq.s32.totalorder %s43, 0
      %p430 = por %p428, %p429
      %p431 = scmp.ne.s32.totalorder %s420, %s423
      %p432 = scmp.eq.s32.totalorder %s48, 3
      %p433 = por %p431, %p432
      %p434 = scmp.ne.s32.totalorder %s423, %s424
      %p435 = scmp.eq.s32.totalorder %s48, 0
      %p436 = por %p434, %p435
      %p437 = scmp.ne.s32.totalorder %s423, %s424
      %p438 = scmp.eq.s32.totalorder %s49, 3
      %p439 = por %p437, %p438
      %p441 = scmp.ne.s32.totalorder %s424, %s440
      %p442 = scmp.eq.s32.totalorder %s49, 0
      %p443 = por %p441, %p442
      %p444 = scmp.le.s32.totalorder 1, %s43
      %p445 = scmp.lt.s32.totalorder %s43, 5
      %p446 = pnand %p444, %p445
      %p447 = pneg %p446
      // Predicated region
      $region9: #{tpu_custom_call.1} parent=5 // pred_check
        _
      $region10: #{tpu_custom_call.1} parent=5 // pred_check_branch
        %449 = sbr.rel (%p446) target = $region12
      $region11: #{tpu_custom_call.1} parent=5 // pred_region
        %s450 = ssub.s32 %s43, 1
      $region12: #{tpu_custom_call.1} parent=5 // pred_fallthru
        _
      %p451 = scmp.lt.s32.totalorder %s43, 4
      // Predicated region
      $region13: #{tpu_custom_call.1} parent=5 // pred_check
        %p452 = pneg %p451
      $region14: #{tpu_custom_call.1} parent=5 // pred_check_branch
        %454 = sbr.rel (%p452) target = $region16
      $region15: #{tpu_custom_call.1} parent=5 // pred_region
        // Predicated region
        $region17: #{tpu_custom_call.1} parent=15 // pred_check
          %p455 = pneg %p84
        $region18: #{tpu_custom_call.1} parent=15 // pred_check_branch
          %457 = sbr.rel (%p455) target = $region20
        $region19: #{tpu_custom_call.1} parent=15 // pred_region
          %s458 = sand.u32 %s74, 1
          %s459 = scalar_lea.sflag [#allocation3], %s458
          %s460 = sand.u32 %s74, 1
          %s461 = smul.addr %s460, 8
          %s462 = scalar_lea.vmem [#allocation2], %s461
          %464 = vsyncadd %s459, 0
          %s465 = sadd.s32 %s52, %s50
          %s466 = smul.addr %s465, 8
          %s467 = scalar_lea.hbm %s0, %s466
          %s469 = sshll.u32 %s467, 4
          %s470 = int_to_ptr.hbm [resolvable:$true] %s469
          %s471 = sshll.u32 %s462, 4
          %s472 = int_to_ptr.vmem [resolvable:$true] %s471
          %474 = dma.hbm_to_vmem [thread:$0]  %s470, 128, %s472, %s459
        $region20: #{tpu_custom_call.1} parent=15 // pred_fallthru
          _
        // Predicated region
        $region21: #{tpu_custom_call.1} parent=15 // pred_check
          %p475 = pneg %p110
        $region22: #{tpu_custom_call.1} parent=15 // pred_check_branch
          %477 = sbr.rel (%p475) target = $region24
        $region23: #{tpu_custom_call.1} parent=15 // pred_region
          %s478 = sand.u32 %s43, 1
          %s479 = scalar_lea.sflag [#allocation6], %s478
          %s480 = sand.u32 %s100, 1
          %s481 = smul.addr %s480, 8
          %s482 = scalar_lea.vmem [#allocation5], %s481
          %484 = vsyncadd %s479, 0
          %s485 = smul.addr %s50, 8
          %s486 = scalar_lea.hbm %s1, %s485
          %s488 = sshll.u32 %s486, 4
          %s489 = int_to_ptr.hbm [resolvable:$true] %s488
          %s490 = sshll.u32 %s482, 4
          %s491 = int_to_ptr.vmem [resolvable:$true] %s490
          %493 = dma.hbm_to_vmem [thread:$0]  %s489, 128, %s491, %s479
        $region24: #{tpu_custom_call.1} parent=15 // pred_fallthru
          _
        // Predicated region
        $region25: #{tpu_custom_call.1} parent=15 // pred_check
          %p494 = pneg %p140
        $region26: #{tpu_custom_call.1} parent=15 // pred_check_branch
          %496 = sbr.rel (%p494) target = $region28
        $region27: #{tpu_custom_call.1} parent=15 // pred_region
          %s497 = sand.u32 %s43, 1
          %s498 = scalar_lea.sflag [#allocation6], %s497
          %s499 = sand.u32 %s130, 1
          %s500 = smul.addr %s499, 8
          %s501 = scalar_lea.vmem [#allocation7], %s500
          %503 = vsyncadd %s498, 0
          %s504 = sadd.s32 %s52, %s51
          %s505 = smul.addr %s50, 2
          %s506 = sadd.s32 %s504, %s505
          %s507 = smul.addr %s506, 8
          %s508 = scalar_lea.hbm %s2, %s507
          %s510 = sshll.u32 %s508, 4
          %s511 = int_to_ptr.hbm [resolvable:$true] %s510
          %s512 = sshll.u32 %s501, 4
          %s513 = int_to_ptr.vmem [resolvable:$true] %s512
          %515 = dma.hbm_to_vmem [thread:$0]  %s511, 128, %s513, %s498
        $region28: #{tpu_custom_call.1} parent=15 // pred_fallthru
          _
        // Predicated region
        $region29: #{tpu_custom_call.1} parent=15 // pred_check
          %p516 = pneg %p170
        $region30: #{tpu_custom_call.1} parent=15 // pred_check_branch
          %518 = sbr.rel (%p516) target = $region32
        $region31: #{tpu_custom_call.1} parent=15 // pred_region
          %s519 = sand.u32 %s43, 1
          %s520 = scalar_lea.sflag [#allocation9], %s519
          %s521 = sand.u32 %s160, 1
          %s522 = smul.addr %s521, 8
          %s523 = scalar_lea.vmem [#allocation8], %s522
          %525 = vsyncadd %s520, 0
          %s526 = sadd.s32 %s52, %s51
          %s527 = smul.addr %s50, 2
          %s528 = sadd.s32 %s526, %s527
          %s529 = smul.addr %s528, 8
          %s530 = scalar_lea.hbm %s3, %s529
          %s532 = sshll.u32 %s530, 4
          %s533 = int_to_ptr.hbm [resolvable:$true] %s532
          %s534 = sshll.u32 %s523, 4
          %s535 = int_to_ptr.vmem [resolvable:$true] %s534
          %537 = dma.hbm_to_vmem [thread:$0]  %s533, 128, %s535, %s520
        $region32: #{tpu_custom_call.1} parent=15 // pred_fallthru
          _
        // Predicated region
        $region33: #{tpu_custom_call.1} parent=15 // pred_check
          %p538 = pneg %p200
        $region34: #{tpu_custom_call.1} parent=15 // pred_check_branch
          %540 = sbr.rel (%p538) target = $region36
        $region35: #{tpu_custom_call.1} parent=15 // pred_region
          %s541 = sand.u32 %s43, 1
          %s542 = scalar_lea.sflag [#allocation9], %s541
          %s543 = sand.u32 %s190, 1
          %s544 = smul.addr %s543, 8
          %s545 = scalar_lea.vmem [#allocation10], %s544
          %547 = vsyncadd %s542, 0
          %s548 = sadd.s32 %s52, %s51
          %s549 = smul.addr %s50, 2
          %s550 = sadd.s32 %s548, %s549
          %s551 = smul.addr %s550, 8
          %s552 = scalar_lea.hbm %s4, %s551
          %s554 = sshll.u32 %s552, 4
          %s555 = int_to_ptr.hbm [resolvable:$true] %s554
          %s556 = sshll.u32 %s545, 4
          %s557 = int_to_ptr.vmem [resolvable:$true] %s556
          %559 = dma.hbm_to_vmem [thread:$0]  %s555, 128, %s557, %s542
        $region36: #{tpu_custom_call.1} parent=15 // pred_fallthru
          _
        // Predicated region
        $region37: #{tpu_custom_call.1} parent=15 // pred_check
          %p560 = pneg %p230
        $region38: #{tpu_custom_call.1} parent=15 // pred_check_branch
          %562 = sbr.rel (%p560) target = $region40
        $region39: #{tpu_custom_call.1} parent=15 // pred_region
          %s563 = sand.u32 %s43, 1
          %s564 = scalar_lea.sflag [#allocation12], %s563
          %s565 = sand.u32 %s220, 1
          %s566 = smul.addr %s565, 8
          %s567 = scalar_lea.vmem [#allocation11], %s566
          %569 = vsyncadd %s564, 0
          %s570 = sadd.s32 %s52, %s51
          %s571 = smul.addr %s50, 2
          %s572 = sadd.s32 %s570, %s571
          %s573 = smul.addr %s572, 8
          %s574 = scalar_lea.hbm %s5, %s573
          %s576 = sshll.u32 %s574, 4
          %s577 = int_to_ptr.hbm [resolvable:$true] %s576
          %s578 = sshll.u32 %s567, 4
          %s579 = int_to_ptr.vmem [resolvable:$true] %s578
          %581 = dma.hbm_to_vmem [thread:$0]  %s577, 128, %s579, %s564
        $region40: #{tpu_custom_call.1} parent=15 // pred_fallthru
          _
        // Predicated region
        $region41: #{tpu_custom_call.1} parent=15 // pred_check
          %p582 = pneg %p258
        $region42: #{tpu_custom_call.1} parent=15 // pred_check_branch
          %584 = sbr.rel (%p582) target = $region44
        $region43: #{tpu_custom_call.1} parent=15 // pred_region
          %s585 = sand.u32 %s43, 1
          %s586 = scalar_lea.sflag [#allocation12], %s585
          %s587 = sand.u32 %s248, 1
          %s588 = smul.addr %s587, 8
          %s589 = scalar_lea.vmem [#allocation13], %s588
          %591 = vsyncadd %s586, 0
          %s592 = smul.addr %s50, 2
          %s593 = sadd.s32 %s51, %s592
          %s594 = smul.addr %s593, 8
          %s595 = scalar_lea.hbm %s6, %s594
          %s597 = sshll.u32 %s595, 4
          %s598 = int_to_ptr.hbm [resolvable:$true] %s597
          %s599 = sshll.u32 %s589, 4
          %s600 = int_to_ptr.vmem [resolvable:$true] %s599
          %602 = dma.hbm_to_vmem [thread:$0]  %s598, 128, %s600, %s586
        $region44: #{tpu_custom_call.1} parent=15 // pred_fallthru
          _
        // Predicated region
        $region45: #{tpu_custom_call.1} parent=15 // pred_check
          %p603 = pneg %p286
        $region46: #{tpu_custom_call.1} parent=15 // pred_check_branch
          %605 = sbr.rel (%p603) target = $region48
        $region47: #{tpu_custom_call.1} parent=15 // pred_region
          %s606 = sand.u32 %s43, 1
          %s607 = scalar_lea.sflag [#allocation15], %s606
          %s608 = sand.u32 %s276, 1
          %s609 = smul.addr %s608, 8
          %s610 = scalar_lea.vmem [#allocation14], %s609
          %612 = vsyncadd %s607, 0
          %s613 = smul.addr %s50, 2
          %s614 = sadd.s32 %s51, %s613
          %s615 = smul.addr %s614, 8
          %s616 = scalar_lea.hbm %s7, %s615
          %s618 = sshll.u32 %s616, 4
          %s619 = int_to_ptr.hbm [resolvable:$true] %s618
          %s620 = sshll.u32 %s610, 4
          %s621 = int_to_ptr.vmem [resolvable:$true] %s620
          %623 = dma.hbm_to_vmem [thread:$0]  %s619, 128, %s621, %s607
        $region48: #{tpu_custom_call.1} parent=15 // pred_fallthru
          _
        // Predicated region
        $region49: #{tpu_custom_call.1} parent=15 // pred_check
          %p624 = pneg %p314
        $region50: #{tpu_custom_call.1} parent=15 // pred_check_branch
          %626 = sbr.rel (%p624) target = $region52
        $region51: #{tpu_custom_call.1} parent=15 // pred_region
          %s627 = sand.u32 %s43, 1
          %s628 = scalar_lea.sflag [#allocation15], %s627
          %s629 = sand.u32 %s304, 1
          %s630 = smul.addr %s629, 8
          %s631 = scalar_lea.vmem [#allocation16], %s630
          %633 = vsyncadd %s628, 0
          %s634 = smul.addr %s50, 2
          %s635 = sadd.s32 %s51, %s634
          %s636 = smul.addr %s635, 8
          %s637 = scalar_lea.hbm %s8, %s636
          %s639 = sshll.u32 %s637, 4
          %s640 = int_to_ptr.hbm [resolvable:$true] %s639
          %s641 = sshll.u32 %s631, 4
          %s642 = int_to_ptr.vmem [resolvable:$true] %s641
          %644 = dma.hbm_to_vmem [thread:$0]  %s640, 128, %s642, %s628
        $region52: #{tpu_custom_call.1} parent=15 // pred_fallthru
          _
        // Predicated region
        $region53: #{tpu_custom_call.1} parent=15 // pred_check
          %p645 = pneg %p342
        $region54: #{tpu_custom_call.1} parent=15 // pred_check_branch
          %647 = sbr.rel (%p645) target = $region56
        $region55: #{tpu_custom_call.1} parent=15 // pred_region
          %s648 = sand.u32 %s43, 1
          %s649 = scalar_lea.sflag [#allocation18], %s648
          %s650 = sand.u32 %s332, 1
          %s651 = smul.addr %s650, 8
          %s652 = scalar_lea.vmem [#allocation17], %s651
          %654 = vsyncadd %s649, 0
          %s655 = smul.addr %s50, 2
          %s656 = sadd.s32 %s51, %s655
          %s657 = smul.addr %s656, 8
          %s658 = scalar_lea.hbm %s9, %s657
          %s660 = sshll.u32 %s658, 4
          %s661 = int_to_ptr.hbm [resolvable:$true] %s660
          %s662 = sshll.u32 %s652, 4
          %s663 = int_to_ptr.vmem [resolvable:$true] %s662
          %665 = dma.hbm_to_vmem [thread:$0]  %s661, 128, %s663, %s649
        $region56: #{tpu_custom_call.1} parent=15 // pred_fallthru
          _
        // Predicated region
        $region57: #{tpu_custom_call.1} parent=15 // pred_check
          %p666 = pneg %p370
        $region58: #{tpu_custom_call.1} parent=15 // pred_check_branch
          %668 = sbr.rel (%p666) target = $region60
        $region59: #{tpu_custom_call.1} parent=15 // pred_region
          %s669 = sand.u32 %s43, 1
          %s670 = scalar_lea.sflag [#allocation18], %s669
          %s671 = sand.u32 %s360, 1
          %s672 = smul.addr %s671, 8
          %s673 = scalar_lea.vmem [#allocation19], %s672
          %675 = vsyncadd %s670, 0
          %s676 = smul.addr %s50, 2
          %s677 = sadd.s32 %s51, %s676
          %s678 = smul.addr %s677, 8
          %s679 = scalar_lea.hbm %s10, %s678
          %s681 = sshll.u32 %s679, 4
          %s682 = int_to_ptr.hbm [resolvable:$true] %s681
          %s683 = sshll.u32 %s673, 4
          %s684 = int_to_ptr.vmem [resolvable:$true] %s683
          %686 = dma.hbm_to_vmem [thread:$0]  %s682, 128, %s684, %s670
        $region60: #{tpu_custom_call.1} parent=15 // pred_fallthru
          _
      $region16: #{tpu_custom_call.1} parent=5 // pred_fallthru
        _
      %p687 = scmp.le.s32.totalorder 1, %s43
      %p688 = scmp.lt.s32.totalorder %s43, 5
      %p689 = pnand %p687, %p688
      %p690 = pneg %p689
      // Predicated region
      $region61: #{tpu_custom_call.1} parent=5 // pred_check
        _
      $region62: #{tpu_custom_call.1} parent=5 // pred_check_branch
        %692 = sbr.rel (%p689) target = $region64
      $region63: #{tpu_custom_call.1} parent=5 // pred_region
        %s693 = ssub.s32 %s43, 1
        %s694 = sand.u32 %s77, 1
        %s695 = scalar_lea.sflag [#allocation3], %s694
        %s696 = sand.u32 %s77, 1
        %s697 = smul.addr %s696, 8
        %s698 = scalar_lea.vmem [#allocation2], %s697
        // Predicated region
        $region65: #{tpu_custom_call.1} parent=63 // pred_check
          %p699 = pneg %p90
        $region66: #{tpu_custom_call.1} parent=63 // pred_check_branch
          %701 = sbr.rel (%p699) target = $region68
        $region67: #{tpu_custom_call.1} parent=63 // pred_region
          %703 = dma.done %s695, 128
        $region68: #{tpu_custom_call.1} parent=63 // pred_fallthru
          _
        %s704 = sand.u32 %s48, 1
        %s705 = scalar_lea.sflag [#allocation6], %s704
        %s706 = sand.u32 %s103, 1
        %s707 = smul.addr %s706, 8
        %s708 = scalar_lea.vmem [#allocation5], %s707
        // Predicated region
        $region69: #{tpu_custom_call.1} parent=63 // pred_check
          %p709 = pneg %p116
        $region70: #{tpu_custom_call.1} parent=63 // pred_check_branch
          %711 = sbr.rel (%p709) target = $region72
        $region71: #{tpu_custom_call.1} parent=63 // pred_region
          %713 = dma.done %s705, 128
        $region72: #{tpu_custom_call.1} parent=63 // pred_fallthru
          _
        %s714 = sand.u32 %s48, 1
        %s715 = scalar_lea.sflag [#allocation6], %s714
        %s716 = sand.u32 %s133, 1
        %s717 = smul.addr %s716, 8
        %s718 = scalar_lea.vmem [#allocation7], %s717
        // Predicated region
        $region73: #{tpu_custom_call.1} parent=63 // pred_check
          %p719 = pneg %p146
        $region74: #{tpu_custom_call.1} parent=63 // pred_check_branch
          %721 = sbr.rel (%p719) target = $region76
        $region75: #{tpu_custom_call.1} parent=63 // pred_region
          %723 = dma.done %s715, 128
        $region76: #{tpu_custom_call.1} parent=63 // pred_fallthru
          _
        %s724 = sand.u32 %s48, 1
        %s725 = scalar_lea.sflag [#allocation9], %s724
        %s726 = sand.u32 %s163, 1
        %s727 = smul.addr %s726, 8
        %s728 = scalar_lea.vmem [#allocation8], %s727
        // Predicated region
        $region77: #{tpu_custom_call.1} parent=63 // pred_check
          %p729 = pneg %p176
        $region78: #{tpu_custom_call.1} parent=63 // pred_check_branch
          %731 = sbr.rel (%p729) target = $region80
        $region79: #{tpu_custom_call.1} parent=63 // pred_region
          %733 = dma.done %s725, 128
        $region80: #{tpu_custom_call.1} parent=63 // pred_fallthru
          _
        %s734 = sand.u32 %s48, 1
        %s735 = scalar_lea.sflag [#allocation9], %s734
        %s736 = sand.u32 %s193, 1
        %s737 = smul.addr %s736, 8
        %s738 = scalar_lea.vmem [#allocation10], %s737
        // Predicated region
        $region81: #{tpu_custom_call.1} parent=63 // pred_check
          %p739 = pneg %p206
        $region82: #{tpu_custom_call.1} parent=63 // pred_check_branch
          %741 = sbr.rel (%p739) target = $region84
        $region83: #{tpu_custom_call.1} parent=63 // pred_region
          %743 = dma.done %s735, 128
        $region84: #{tpu_custom_call.1} parent=63 // pred_fallthru
          _
        %s744 = sand.u32 %s48, 1
        %s745 = scalar_lea.sflag [#allocation12], %s744
        %s746 = sand.u32 %s223, 1
        %s747 = smul.addr %s746, 8
        %s748 = scalar_lea.vmem [#allocation11], %s747
        // Predicated region
        $region85: #{tpu_custom_call.1} parent=63 // pred_check
          %p749 = pneg %p236
        $region86: #{tpu_custom_call.1} parent=63 // pred_check_branch
          %751 = sbr.rel (%p749) target = $region88
        $region87: #{tpu_custom_call.1} parent=63 // pred_region
          %753 = dma.done %s745, 128
        $region88: #{tpu_custom_call.1} parent=63 // pred_fallthru
          _
        %s754 = sand.u32 %s48, 1
        %s755 = scalar_lea.sflag [#allocation12], %s754
        %s756 = sand.u32 %s251, 1
        %s757 = smul.addr %s756, 8
        %s758 = scalar_lea.vmem [#allocation13], %s757
        // Predicated region
        $region89: #{tpu_custom_call.1} parent=63 // pred_check
          %p759 = pneg %p264
        $region90: #{tpu_custom_call.1} parent=63 // pred_check_branch
          %761 = sbr.rel (%p759) target = $region92
        $region91: #{tpu_custom_call.1} parent=63 // pred_region
          %763 = dma.done %s755, 128
        $region92: #{tpu_custom_call.1} parent=63 // pred_fallthru
          _
        %s764 = sand.u32 %s48, 1
        %s765 = scalar_lea.sflag [#allocation15], %s764
        %s766 = sand.u32 %s279, 1
        %s767 = smul.addr %s766, 8
        %s768 = scalar_lea.vmem [#allocation14], %s767
        // Predicated region
        $region93: #{tpu_custom_call.1} parent=63 // pred_check
          %p769 = pneg %p292
        $region94: #{tpu_custom_call.1} parent=63 // pred_check_branch
          %771 = sbr.rel (%p769) target = $region96
        $region95: #{tpu_custom_call.1} parent=63 // pred_region
          %773 = dma.done %s765, 128
        $region96: #{tpu_custom_call.1} parent=63 // pred_fallthru
          _
        %s774 = sand.u32 %s48, 1
        %s775 = scalar_lea.sflag [#allocation15], %s774
        %s776 = sand.u32 %s307, 1
        %s777 = smul.addr %s776, 8
        %s778 = scalar_lea.vmem [#allocation16], %s777
        // Predicated region
        $region97: #{tpu_custom_call.1} parent=63 // pred_check
          %p779 = pneg %p320
        $region98: #{tpu_custom_call.1} parent=63 // pred_check_branch
          %781 = sbr.rel (%p779) target = $region100
        $region99: #{tpu_custom_call.1} parent=63 // pred_region
          %783 = dma.done %s775, 128
        $region100: #{tpu_custom_call.1} parent=63 // pred_fallthru
          _
        %s784 = sand.u32 %s48, 1
        %s785 = scalar_lea.sflag [#allocation18], %s784
        %s786 = sand.u32 %s335, 1
        %s787 = smul.addr %s786, 8
        %s788 = scalar_lea.vmem [#allocation17], %s787
        // Predicated region
        $region101: #{tpu_custom_call.1} parent=63 // pred_check
          %p789 = pneg %p348
        $region102: #{tpu_custom_call.1} parent=63 // pred_check_branch
          %791 = sbr.rel (%p789) target = $region104
        $region103: #{tpu_custom_call.1} parent=63 // pred_region
          %793 = dma.done %s785, 128
        $region104: #{tpu_custom_call.1} parent=63 // pred_fallthru
          _
        %s794 = sand.u32 %s48, 1
        %s795 = scalar_lea.sflag [#allocation18], %s794
        %s796 = sand.u32 %s363, 1
        %s797 = smul.addr %s796, 8
        %s798 = scalar_lea.vmem [#allocation19], %s797
        // Predicated region
        $region105: #{tpu_custom_call.1} parent=63 // pred_check
          %p799 = pneg %p376
        $region106: #{tpu_custom_call.1} parent=63 // pred_check_branch
          %801 = sbr.rel (%p799) target = $region108
        $region107: #{tpu_custom_call.1} parent=63 // pred_region
          %803 = dma.done %s795, 128
        $region108: #{tpu_custom_call.1} parent=63 // pred_fallthru
          _
        %s804 = sand.u32 %s77, 1
        %s805 = scalar_lea.sflag [#allocation3], %s804
        %s806 = sand.u32 %s77, 1
        %s807 = smul.addr %s806, 8
        %s808 = scalar_lea.vmem [#allocation2], %s807
        %p809 = pneg %p90
        %p810 = pneg %p87
        %s811 = sand.u32 %s48, 1
        %s812 = scalar_lea.sflag [#allocation6], %s811
        %s813 = sand.u32 %s103, 1
        %s814 = smul.addr %s813, 8
        %s815 = scalar_lea.vmem [#allocation5], %s814
        %p816 = pneg %p116
        %p817 = pneg %p113
        %s818 = sand.u32 %s48, 1
        %s819 = scalar_lea.sflag [#allocation6], %s818
        %s820 = sand.u32 %s133, 1
        %s821 = smul.addr %s820, 8
        %s822 = scalar_lea.vmem [#allocation7], %s821
        %p823 = pneg %p146
        %p824 = pneg %p143
        %s825 = sand.u32 %s48, 1
        %s826 = scalar_lea.sflag [#allocation9], %s825
        %s827 = sand.u32 %s163, 1
        %s828 = smul.addr %s827, 8
        %s829 = scalar_lea.vmem [#allocation8], %s828
        %p830 = pneg %p176
        %p831 = pneg %p173
        %s832 = sand.u32 %s48, 1
        %s833 = scalar_lea.sflag [#allocation9], %s832
        %s834 = sand.u32 %s193, 1
        %s835 = smul.addr %s834, 8
        %s836 = scalar_lea.vmem [#allocation10], %s835
        %p837 = pneg %p206
        %p838 = pneg %p203
        %s839 = sand.u32 %s48, 1
        %s840 = scalar_lea.sflag [#allocation12], %s839
        %s841 = sand.u32 %s223, 1
        %s842 = smul.addr %s841, 8
        %s843 = scalar_lea.vmem [#allocation11], %s842
        %p844 = pneg %p236
        %p845 = pneg %p233
        %s846 = sand.u32 %s48, 1
        %s847 = scalar_lea.sflag [#allocation12], %s846
        %s848 = sand.u32 %s251, 1
        %s849 = smul.addr %s848, 8
        %s850 = scalar_lea.vmem [#allocation13], %s849
        %p851 = pneg %p264
        %p852 = pneg %p261
        %s853 = sand.u32 %s48, 1
        %s854 = scalar_lea.sflag [#allocation15], %s853
        %s855 = sand.u32 %s279, 1
        %s856 = smul.addr %s855, 8
        %s857 = scalar_lea.vmem [#allocation14], %s856
        %p858 = pneg %p292
        %p859 = pneg %p289
        %s860 = sand.u32 %s48, 1
        %s861 = scalar_lea.sflag [#allocation15], %s860
        %s862 = sand.u32 %s307, 1
        %s863 = smul.addr %s862, 8
        %s864 = scalar_lea.vmem [#allocation16], %s863
        %p865 = pneg %p320
        %p866 = pneg %p317
        %s867 = sand.u32 %s48, 1
        %s868 = scalar_lea.sflag [#allocation18], %s867
        %s869 = sand.u32 %s335, 1
        %s870 = smul.addr %s869, 8
        %s871 = scalar_lea.vmem [#allocation17], %s870
        %p872 = pneg %p348
        %p873 = pneg %p345
        %s874 = sand.u32 %s48, 1
        %s875 = scalar_lea.sflag [#allocation18], %s874
        %s876 = sand.u32 %s363, 1
        %s877 = smul.addr %s876, 8
        %s878 = scalar_lea.vmem [#allocation19], %s877
        %p879 = pneg %p376
        %p880 = pneg %p373
        %p881 = pneg %p406
        %p882 = pneg %p403
        %s883 = sand.u32 %s393, 1
        %s884 = scalar_lea.sflag [#allocation4], %s883
        %s885 = sand.u32 %s393, 1
        %s886 = smul.addr %s885, 8
        %s887 = scalar_lea.vmem [#allocation20], %s886
        %p888 = pneg %p436
        %p889 = pneg %p433
        %s890 = sand.u32 %s423, 1
        %s891 = scalar_lea.sflag [#allocation22], %s890
        %s892 = sand.u32 %s423, 1
        %s893 = smul.addr %s892, 8
        %s894 = scalar_lea.vmem [#allocation21], %s893
        %v895 = vld [vmem:[%s718] sm:$0xff]
        %v896 = vld [vmem:[%s728] sm:$0xff]
        %v897 = vld [vmem:[%s738] sm:$0xff]
        %v898 = vld [vmem:[%s748] sm:$0xff]
        %v899 = vld [vmem:[%s698] sm:$0xff]
        %901 = vset.pattern.permute.xlu0 0
        %902 = vperm.xlu0 %901, %v899
        %v903 = vpop.permute.xlu0 %902
        %v905 = vmul.f32 %v903, %v895
        %906 = vset.pattern.permute.xlu0 1
        %907 = vperm.xlu0 %906, %v899
        %v908 = vpop.permute.xlu0 %907
        %v910 = vmul.f32 %v908, %v896
        %v911 = vadd.f32 %v905, %v910
        %912 = vset.pattern.permute.xlu0 2
        %913 = vperm.xlu0 %912, %v899
        %v914 = vpop.permute.xlu0 %913
        %v916 = vmul.f32 %v914, %v897
        %v917 = vadd.f32 %v911, %v916
        %918 = vset.pattern.permute.xlu0 3
        %919 = vperm.xlu0 %918, %v899
        %v920 = vpop.permute.xlu0 %919
        %v922 = vmul.f32 %v920, %v898
        %v923 = vadd.f32 %v917, %v922
        %924 = vset.pattern.permute.xlu0 4
        %925 = vperm.xlu0 %924, %v899
        %v926 = vpop.permute.xlu0 %925
        %v928 = vmul.f32 %v926, %v895
        %929 = vset.pattern.permute.xlu0 5
        %930 = vperm.xlu0 %929, %v899
        %v931 = vpop.permute.xlu0 %930
        %v933 = vmul.f32 %v931, %v896
        %v934 = vadd.f32 %v928, %v933
        %935 = vset.pattern.permute.xlu0 6
        %936 = vperm.xlu0 %935, %v899
        %v937 = vpop.permute.xlu0 %936
        %v939 = vmul.f32 %v937, %v897
        %v940 = vadd.f32 %v934, %v939
        %941 = vset.pattern.permute.xlu0 7
        %942 = vperm.xlu0 %941, %v899
        %v943 = vpop.permute.xlu0 %942
        %v945 = vmul.f32 %v943, %v898
        %v946 = vadd.f32 %v940, %v945
        %947 = vset.pattern.permute.xlu0 8
        %948 = vperm.xlu0 %947, %v899
        %v949 = vpop.permute.xlu0 %948
        %v951 = vmul.f32 %v949, %v895
        %952 = vset.pattern.permute.xlu0 9
        %953 = vperm.xlu0 %952, %v899
        %v954 = vpop.permute.xlu0 %953
        %v956 = vmul.f32 %v954, %v896
        %v957 = vadd.f32 %v951, %v956
        %958 = vset.pattern.permute.xlu0 10
        %959 = vperm.xlu0 %958, %v899
        %v960 = vpop.permute.xlu0 %959
        %v962 = vmul.f32 %v960, %v897
        %v963 = vadd.f32 %v957, %v962
        %964 = vset.pattern.permute.xlu0 11
        %965 = vperm.xlu0 %964, %v899
        %v966 = vpop.permute.xlu0 %965
        %v968 = vmul.f32 %v966, %v898
        %v969 = vadd.f32 %v963, %v968
        %970 = vset.pattern.permute.xlu0 12
        %971 = vperm.xlu0 %970, %v899
        %v972 = vpop.permute.xlu0 %971
        %v974 = vmul.f32 %v972, %v895
        %975 = vset.pattern.permute.xlu0 13
        %976 = vperm.xlu0 %975, %v899
        %v977 = vpop.permute.xlu0 %976
        %v979 = vmul.f32 %v977, %v896
        %v980 = vadd.f32 %v974, %v979
        %981 = vset.pattern.permute.xlu0 14
        %982 = vperm.xlu0 %981, %v899
        %v983 = vpop.permute.xlu0 %982
        %v985 = vmul.f32 %v983, %v897
        %v986 = vadd.f32 %v980, %v985
        %987 = vset.pattern.permute.xlu0 15
        %988 = vperm.xlu0 %987, %v899
        %v989 = vpop.permute.xlu0 %988
        %v991 = vmul.f32 %v989, %v898
        %v992 = vadd.f32 %v986, %v991
        %v993 = vld [vmem:[%s758] sm:$0xff]
        %v994 = vld [vmem:[%s768] sm:$0xff]
        %v995 = vld [vmem:[%s778] sm:$0xff]
        %v996 = vld [vmem:[%s788] sm:$0xff]
        %v997 = vld [vmem:[%s708] sm:$0xff]
        %999 = vset.pattern.permute.xlu0 0
        %1000 = vperm.xlu0 %999, %v997
        %v1001 = vpop.permute.xlu0 %1000
        %v1003 = vmul.f32 %v1001, %v993
        %1004 = vset.pattern.permute.xlu0 1
        %1005 = vperm.xlu0 %1004, %v997
        %v1006 = vpop.permute.xlu0 %1005
        %v1008 = vmul.f32 %v1006, %v994
        %v1009 = vadd.f32 %v1003, %v1008
        %1010 = vset.pattern.permute.xlu0 2
        %1011 = vperm.xlu0 %1010, %v997
        %v1012 = vpop.permute.xlu0 %1011
        %v1014 = vmul.f32 %v1012, %v995
        %v1015 = vadd.f32 %v1009, %v1014
        %1016 = vset.pattern.permute.xlu0 3
        %1017 = vperm.xlu0 %1016, %v997
        %v1018 = vpop.permute.xlu0 %1017
        %v1020 = vmul.f32 %v1018, %v996
        %v1021 = vadd.f32 %v1015, %v1020
        %1022 = vset.pattern.permute.xlu0 4
        %1023 = vperm.xlu0 %1022, %v997
        %v1024 = vpop.permute.xlu0 %1023
        %v1026 = vmul.f32 %v1024, %v993
        %1027 = vset.pattern.permute.xlu0 5
        %1028 = vperm.xlu0 %1027, %v997
        %v1029 = vpop.permute.xlu0 %1028
        %v1031 = vmul.f32 %v1029, %v994
        %v1032 = vadd.f32 %v1026, %v1031
        %1033 = vset.pattern.permute.xlu0 6
        %1034 = vperm.xlu0 %1033, %v997
        %v1035 = vpop.permute.xlu0 %1034
        %v1037 = vmul.f32 %v1035, %v995
        %v1038 = vadd.f32 %v1032, %v1037
        %1039 = vset.pattern.permute.xlu0 7
        %1040 = vperm.xlu0 %1039, %v997
        %v1041 = vpop.permute.xlu0 %1040
        %v1043 = vmul.f32 %v1041, %v996
        %v1044 = vadd.f32 %v1038, %v1043
        %1045 = vset.pattern.permute.xlu0 8
        %1046 = vperm.xlu0 %1045, %v997
        %v1047 = vpop.permute.xlu0 %1046
        %v1049 = vmul.f32 %v1047, %v993
        %1050 = vset.pattern.permute.xlu0 9
        %1051 = vperm.xlu0 %1050, %v997
        %v1052 = vpop.permute.xlu0 %1051
        %v1054 = vmul.f32 %v1052, %v994
        %v1055 = vadd.f32 %v1049, %v1054
        %1056 = vset.pattern.permute.xlu0 10
        %1057 = vperm.xlu0 %1056, %v997
        %v1058 = vpop.permute.xlu0 %1057
        %v1060 = vmul.f32 %v1058, %v995
        %v1061 = vadd.f32 %v1055, %v1060
        %1062 = vset.pattern.permute.xlu0 11
        %1063 = vperm.xlu0 %1062, %v997
        %v1064 = vpop.permute.xlu0 %1063
        %v1066 = vmul.f32 %v1064, %v996
        %v1067 = vadd.f32 %v1061, %v1066
        %1068 = vset.pattern.permute.xlu0 12
        %1069 = vperm.xlu0 %1068, %v997
        %v1070 = vpop.permute.xlu0 %1069
        %v1072 = vmul.f32 %v1070, %v993
        %1073 = vset.pattern.permute.xlu0 13
        %1074 = vperm.xlu0 %1073, %v997
        %v1075 = vpop.permute.xlu0 %1074
        %v1077 = vmul.f32 %v1075, %v994
        %v1078 = vadd.f32 %v1072, %v1077
        %1079 = vset.pattern.permute.xlu0 14
        %1080 = vperm.xlu0 %1079, %v997
        %v1081 = vpop.permute.xlu0 %1080
        %v1083 = vmul.f32 %v1081, %v995
        %v1084 = vadd.f32 %v1078, %v1083
        %1085 = vset.pattern.permute.xlu0 15
        %1086 = vperm.xlu0 %1085, %v997
        %v1087 = vpop.permute.xlu0 %1086
        %v1089 = vmul.f32 %v1087, %v996
        %v1090 = vadd.f32 %v1084, %v1089
        %vm1091 = vcmask 64512
        %v1093 = vsel %vm1091, %v946, 0
        %v1096 = vsel %vm1091, %v1044, 0
        %1098 = vmatpush.xpose.msra.mxu0 0.0
        %1099 = vmatpush.xpose.msra.mxu0 0.0
        %1100 = vmatpush.xpose.msra.mxu0 0.0
        %1101 = vmatpush.xpose.msra.mxu0 0.0
        %1102 = vmatpush.xpose.msra.mxu0 0.0
        %1103 = vmatpush.xpose.msra.mxu0 0.0
        %1104 = vmatpush.xpose.msra.mxu0 0.0
        %1105 = vmatpush.xpose.msra.mxu0 0.0
        %1106 = vmatpush.xpose.msra.mxu0 0.0
        %1107 = vmatpush.xpose.msra.mxu0 0.0
        %1108 = vmatpush.xpose.msra.mxu0 0.0
        %1109 = vmatpush.xpose.msra.mxu0 0.0
        %1110 = vmatpush.xpose.msra.mxu0 0.0
        %1111 = vmatpush.xpose.msra.mxu0 0.0
        %1112 = vmatpush.xpose.msra.mxu0 0.0
        %v1113 = vand.u32 %v1096, 4294901760
        %1114 = vmatpush.xpose.msra.mxu0 %v1113
        %v1115 = vand.u32 %v1093, 4294901760
        %v1116 = vsub.f32 %v1093, %v1115
        %v1117 = vand.u32 %v1116, 4294901760
        %v1118 = vsub.f32 %v1116, %v1117
        %v1119 = vand.u32 %v1118, 4294901760
        %1120 = vmatmul.f32.gmra.mxu0 %v1119
        %v1121 = vpop.f32.mrf.mxu0
        %v1122 = vadd.f32 0.0, %v1121
        %1123 = vdwg.mxu0
        %1124 = vmatpush.xpose.msra.mxu0 0.0
        %1125 = vmatpush.xpose.msra.mxu0 0.0
        %1126 = vmatpush.xpose.msra.mxu0 0.0
        %1127 = vmatpush.xpose.msra.mxu0 0.0
        %1128 = vmatpush.xpose.msra.mxu0 0.0
        %1129 = vmatpush.xpose.msra.mxu0 0.0
        %1130 = vmatpush.xpose.msra.mxu0 0.0
        %1131 = vmatpush.xpose.msra.mxu0 0.0
        %1132 = vmatpush.xpose.msra.mxu0 0.0
        %1133 = vmatpush.xpose.msra.mxu0 0.0
        %1134 = vmatpush.xpose.msra.mxu0 0.0
        %1135 = vmatpush.xpose.msra.mxu0 0.0
        %1136 = vmatpush.xpose.msra.mxu0 0.0
        %1137 = vmatpush.xpose.msra.mxu0 0.0
        %1138 = vmatpush.xpose.msra.mxu0 0.0
        %v1139 = vand.u32 %v1096, 4294901760
        %v1140 = vsub.f32 %v1096, %v1139
        %v1141 = vand.u32 %v1140, 4294901760
        %v1142 = vsub.f32 %v1140, %v1141
        %v1143 = vand.u32 %v1142, 4294901760
        %1144 = vmatpush.xpose.msra.mxu0 %v1143
        %v1145 = vand.u32 %v1093, 4294901760
        %1146 = vmatmul.f32.gmra.mxu0 %v1145
        %v1147 = vpop.f32.mrf.mxu0
        %v1148 = vadd.f32 %v1122, %v1147
        %1149 = vdwg.mxu0
        %1150 = vmatpush.xpose.msra.mxu0 0.0
        %1151 = vmatpush.xpose.msra.mxu0 0.0
        %1152 = vmatpush.xpose.msra.mxu0 0.0
        %1153 = vmatpush.xpose.msra.mxu0 0.0
        %1154 = vmatpush.xpose.msra.mxu0 0.0
        %1155 = vmatpush.xpose.msra.mxu0 0.0
        %1156 = vmatpush.xpose.msra.mxu0 0.0
        %1157 = vmatpush.xpose.msra.mxu0 0.0
        %1158 = vmatpush.xpose.msra.mxu0 0.0
        %1159 = vmatpush.xpose.msra.mxu0 0.0
        %1160 = vmatpush.xpose.msra.mxu0 0.0
        %1161 = vmatpush.xpose.msra.mxu0 0.0
        %1162 = vmatpush.xpose.msra.mxu0 0.0
        %1163 = vmatpush.xpose.msra.mxu0 0.0
        %1164 = vmatpush.xpose.msra.mxu0 0.0
        %v1165 = vand.u32 %v1096, 4294901760
        %v1166 = vsub.f32 %v1096, %v1165
        %1167 = vmatpush.xpose.msra.mxu0 %v1166
        %v1168 = vand.u32 %v1093, 4294901760
        %v1169 = vsub.f32 %v1093, %v1168
        %1170 = vmatmul.f32.gmra.mxu0 %v1169
        %v1171 = vpop.f32.mrf.mxu0
        %v1172 = vadd.f32 %v1148, %v1171
        %1173 = vdwg.mxu0
        %1174 = vmatpush.xpose.msra.mxu0 0.0
        %1175 = vmatpush.xpose.msra.mxu0 0.0
        %1176 = vmatpush.xpose.msra.mxu0 0.0
        %1177 = vmatpush.xpose.msra.mxu0 0.0
        %1178 = vmatpush.xpose.msra.mxu0 0.0
        %1179 = vmatpush.xpose.msra.mxu0 0.0
        %1180 = vmatpush.xpose.msra.mxu0 0.0
        %1181 = vmatpush.xpose.msra.mxu0 0.0
        %1182 = vmatpush.xpose.msra.mxu0 0.0
        %1183 = vmatpush.xpose.msra.mxu0 0.0
        %1184 = vmatpush.xpose.msra.mxu0 0.0
        %1185 = vmatpush.xpose.msra.mxu0 0.0
        %1186 = vmatpush.xpose.msra.mxu0 0.0
        %1187 = vmatpush.xpose.msra.mxu0 0.0
        %1188 = vmatpush.xpose.msra.mxu0 0.0
        %v1189 = vand.u32 %v1096, 4294901760
        %1190 = vmatpush.xpose.msra.mxu0 %v1189
        %v1191 = vand.u32 %v1093, 4294901760
        %v1192 = vsub.f32 %v1093, %v1191
        %v1193 = vand.u32 %v1192, 4294901760
        %1194 = vmatmul.f32.gmra.mxu0 %v1193
        %v1195 = vpop.f32.mrf.mxu0
        %v1196 = vadd.f32 %v1172, %v1195
        %1197 = vdwg.mxu0
        %1198 = vmatpush.xpose.msra.mxu0 0.0
        %1199 = vmatpush.xpose.msra.mxu0 0.0
        %1200 = vmatpush.xpose.msra.mxu0 0.0
        %1201 = vmatpush.xpose.msra.mxu0 0.0
        %1202 = vmatpush.xpose.msra.mxu0 0.0
        %1203 = vmatpush.xpose.msra.mxu0 0.0
        %1204 = vmatpush.xpose.msra.mxu0 0.0
        %1205 = vmatpush.xpose.msra.mxu0 0.0
        %1206 = vmatpush.xpose.msra.mxu0 0.0
        %1207 = vmatpush.xpose.msra.mxu0 0.0
        %1208 = vmatpush.xpose.msra.mxu0 0.0
        %1209 = vmatpush.xpose.msra.mxu0 0.0
        %1210 = vmatpush.xpose.msra.mxu0 0.0
        %1211 = vmatpush.xpose.msra.mxu0 0.0
        %1212 = vmatpush.xpose.msra.mxu0 0.0
        %v1213 = vand.u32 %v1096, 4294901760
        %v1214 = vsub.f32 %v1096, %v1213
        %v1215 = vand.u32 %v1214, 4294901760
        %1216 = vmatpush.xpose.msra.mxu0 %v1215
        %v1217 = vand.u32 %v1093, 4294901760
        %1218 = vmatmul.f32.gmra.mxu0 %v1217
        %v1219 = vpop.f32.mrf.mxu0
        %v1220 = vadd.f32 %v1196, %v1219
        %1221 = vdwg.mxu0
        %1222 = vmatpush.xpose.msra.mxu0 0.0
        %1223 = vmatpush.xpose.msra.mxu0 0.0
        %1224 = vmatpush.xpose.msra.mxu0 0.0
        %1225 = vmatpush.xpose.msra.mxu0 0.0
        %1226 = vmatpush.xpose.msra.mxu0 0.0
        %1227 = vmatpush.xpose.msra.mxu0 0.0
        %1228 = vmatpush.xpose.msra.mxu0 0.0
        %1229 = vmatpush.xpose.msra.mxu0 0.0
        %1230 = vmatpush.xpose.msra.mxu0 0.0
        %1231 = vmatpush.xpose.msra.mxu0 0.0
        %1232 = vmatpush.xpose.msra.mxu0 0.0
        %1233 = vmatpush.xpose.msra.mxu0 0.0
        %1234 = vmatpush.xpose.msra.mxu0 0.0
        %1235 = vmatpush.xpose.msra.mxu0 0.0
        %1236 = vmatpush.xpose.msra.mxu0 0.0
        %v1237 = vand.u32 %v1096, 4294901760
        %1238 = vmatpush.xpose.msra.mxu0 %v1237
        %v1239 = vand.u32 %v1093, 4294901760
        %1240 = vmatmul.f32.gmra.mxu0 %v1239
        %v1241 = vpop.f32.mrf.mxu0
        %v1242 = vadd.f32 %v1220, %v1241
        %1243 = vdwg.mxu0
        %v1245 = vsel %vm1091, %v923, 0
        %v1248 = vsel %vm1091, %v1021, 0
        %1250 = vmatpush.xpose.msra.mxu0 0.0
        %1251 = vmatpush.xpose.msra.mxu0 0.0
        %1252 = vmatpush.xpose.msra.mxu0 0.0
        %1253 = vmatpush.xpose.msra.mxu0 0.0
        %1254 = vmatpush.xpose.msra.mxu0 0.0
        %1255 = vmatpush.xpose.msra.mxu0 0.0
        %1256 = vmatpush.xpose.msra.mxu0 0.0
        %1257 = vmatpush.xpose.msra.mxu0 0.0
        %1258 = vmatpush.xpose.msra.mxu0 0.0
        %1259 = vmatpush.xpose.msra.mxu0 0.0
        %1260 = vmatpush.xpose.msra.mxu0 0.0
        %1261 = vmatpush.xpose.msra.mxu0 0.0
        %1262 = vmatpush.xpose.msra.mxu0 0.0
        %1263 = vmatpush.xpose.msra.mxu0 0.0
        %1264 = vmatpush.xpose.msra.mxu0 0.0
        %v1265 = vand.u32 %v1248, 4294901760
        %1266 = vmatpush.xpose.msra.mxu0 %v1265
        %v1267 = vand.u32 %v1245, 4294901760
        %v1268 = vsub.f32 %v1245, %v1267
        %v1269 = vand.u32 %v1268, 4294901760
        %v1270 = vsub.f32 %v1268, %v1269
        %v1271 = vand.u32 %v1270, 4294901760
        %1272 = vmatmul.f32.gmra.mxu0 %v1271
        %v1273 = vpop.f32.mrf.mxu0
        %v1274 = vadd.f32 %v1242, %v1273
        %1275 = vdwg.mxu0
        %1276 = vmatpush.xpose.msra.mxu0 0.0
        %1277 = vmatpush.xpose.msra.mxu0 0.0
        %1278 = vmatpush.xpose.msra.mxu0 0.0
        %1279 = vmatpush.xpose.msra.mxu0 0.0
        %1280 = vmatpush.xpose.msra.mxu0 0.0
        %1281 = vmatpush.xpose.msra.mxu0 0.0
        %1282 = vmatpush.xpose.msra.mxu0 0.0
        %1283 = vmatpush.xpose.msra.mxu0 0.0
        %1284 = vmatpush.xpose.msra.mxu0 0.0
        %1285 = vmatpush.xpose.msra.mxu0 0.0
        %1286 = vmatpush.xpose.msra.mxu0 0.0
        %1287 = vmatpush.xpose.msra.mxu0 0.0
        %1288 = vmatpush.xpose.msra.mxu0 0.0
        %1289 = vmatpush.xpose.msra.mxu0 0.0
        %1290 = vmatpush.xpose.msra.mxu0 0.0
        %v1291 = vand.u32 %v1248, 4294901760
        %v1292 = vsub.f32 %v1248, %v1291
        %v1293 = vand.u32 %v1292, 4294901760
        %v1294 = vsub.f32 %v1292, %v1293
        %v1295 = vand.u32 %v1294, 4294901760
        %1296 = vmatpush.xpose.msra.mxu0 %v1295
        %v1297 = vand.u32 %v1245, 4294901760
        %1298 = vmatmul.f32.gmra.mxu0 %v1297
        %v1299 = vpop.f32.mrf.mxu0
        %v1300 = vadd.f32 %v1274, %v1299
        %1301 = vdwg.mxu0
        %1302 = vmatpush.xpose.msra.mxu0 0.0
        %1303 = vmatpush.xpose.msra.mxu0 0.0
        %1304 = vmatpush.xpose.msra.mxu0 0.0
        %1305 = vmatpush.xpose.msra.mxu0 0.0
        %1306 = vmatpush.xpose.msra.mxu0 0.0
        %1307 = vmatpush.xpose.msra.mxu0 0.0
        %1308 = vmatpush.xpose.msra.mxu0 0.0
        %1309 = vmatpush.xpose.msra.mxu0 0.0
        %1310 = vmatpush.xpose.msra.mxu0 0.0
        %1311 = vmatpush.xpose.msra.mxu0 0.0
        %1312 = vmatpush.xpose.msra.mxu0 0.0
        %1313 = vmatpush.xpose.msra.mxu0 0.0
        %1314 = vmatpush.xpose.msra.mxu0 0.0
        %1315 = vmatpush.xpose.msra.mxu0 0.0
        %1316 = vmatpush.xpose.msra.mxu0 0.0
        %v1317 = vand.u32 %v1248, 4294901760
        %v1318 = vsub.f32 %v1248, %v1317
        %1319 = vmatpush.xpose.msra.mxu0 %v1318
        %v1320 = vand.u32 %v1245, 4294901760
        %v1321 = vsub.f32 %v1245, %v1320
        %1322 = vmatmul.f32.gmra.mxu0 %v1321
        %v1323 = vpop.f32.mrf.mxu0
        %v1324 = vadd.f32 %v1300, %v1323
        %1325 = vdwg.mxu0
        %1326 = vmatpush.xpose.msra.mxu0 0.0
        %1327 = vmatpush.xpose.msra.mxu0 0.0
        %1328 = vmatpush.xpose.msra.mxu0 0.0
        %1329 = vmatpush.xpose.msra.mxu0 0.0
        %1330 = vmatpush.xpose.msra.mxu0 0.0
        %1331 = vmatpush.xpose.msra.mxu0 0.0
        %1332 = vmatpush.xpose.msra.mxu0 0.0
        %1333 = vmatpush.xpose.msra.mxu0 0.0
        %1334 = vmatpush.xpose.msra.mxu0 0.0
        %1335 = vmatpush.xpose.msra.mxu0 0.0
        %1336 = vmatpush.xpose.msra.mxu0 0.0
        %1337 = vmatpush.xpose.msra.mxu0 0.0
        %1338 = vmatpush.xpose.msra.mxu0 0.0
        %1339 = vmatpush.xpose.msra.mxu0 0.0
        %1340 = vmatpush.xpose.msra.mxu0 0.0
        %v1341 = vand.u32 %v1248, 4294901760
        %1342 = vmatpush.xpose.msra.mxu0 %v1341
        %v1343 = vand.u32 %v1245, 4294901760
        %v1344 = vsub.f32 %v1245, %v1343
        %v1345 = vand.u32 %v1344, 4294901760
        %1346 = vmatmul.f32.gmra.mxu0 %v1345
        %v1347 = vpop.f32.mrf.mxu0
        %v1348 = vadd.f32 %v1324, %v1347
        %1349 = vdwg.mxu0
        %1350 = vmatpush.xpose.msra.mxu0 0.0
        %1351 = vmatpush.xpose.msra.mxu0 0.0
        %1352 = vmatpush.xpose.msra.mxu0 0.0
        %1353 = vmatpush.xpose.msra.mxu0 0.0
        %1354 = vmatpush.xpose.msra.mxu0 0.0
        %1355 = vmatpush.xpose.msra.mxu0 0.0
        %1356 = vmatpush.xpose.msra.mxu0 0.0
        %1357 = vmatpush.xpose.msra.mxu0 0.0
        %1358 = vmatpush.xpose.msra.mxu0 0.0
        %1359 = vmatpush.xpose.msra.mxu0 0.0
        %1360 = vmatpush.xpose.msra.mxu0 0.0
        %1361 = vmatpush.xpose.msra.mxu0 0.0
        %1362 = vmatpush.xpose.msra.mxu0 0.0
        %1363 = vmatpush.xpose.msra.mxu0 0.0
        %1364 = vmatpush.xpose.msra.mxu0 0.0
        %v1365 = vand.u32 %v1248, 4294901760
        %v1366 = vsub.f32 %v1248, %v1365
        %v1367 = vand.u32 %v1366, 4294901760
        %1368 = vmatpush.xpose.msra.mxu0 %v1367
        %v1369 = vand.u32 %v1245, 4294901760
        %1370 = vmatmul.f32.gmra.mxu0 %v1369
        %v1371 = vpop.f32.mrf.mxu0
        %v1372 = vadd.f32 %v1348, %v1371
        %1373 = vdwg.mxu0
        %1374 = vmatpush.xpose.msra.mxu0 0.0
        %1375 = vmatpush.xpose.msra.mxu0 0.0
        %1376 = vmatpush.xpose.msra.mxu0 0.0
        %1377 = vmatpush.xpose.msra.mxu0 0.0
        %1378 = vmatpush.xpose.msra.mxu0 0.0
        %1379 = vmatpush.xpose.msra.mxu0 0.0
        %1380 = vmatpush.xpose.msra.mxu0 0.0
        %1381 = vmatpush.xpose.msra.mxu0 0.0
        %1382 = vmatpush.xpose.msra.mxu0 0.0
        %1383 = vmatpush.xpose.msra.mxu0 0.0
        %1384 = vmatpush.xpose.msra.mxu0 0.0
        %1385 = vmatpush.xpose.msra.mxu0 0.0
        %1386 = vmatpush.xpose.msra.mxu0 0.0
        %1387 = vmatpush.xpose.msra.mxu0 0.0
        %1388 = vmatpush.xpose.msra.mxu0 0.0
        %v1389 = vand.u32 %v1248, 4294901760
        %1390 = vmatpush.xpose.msra.mxu0 %v1389
        %v1391 = vand.u32 %v1245, 4294901760
        %1392 = vmatmul.f32.gmra.mxu0 %v1391
        %v1393 = vpop.f32.mrf.mxu0
        %v1394 = vadd.f32 %v1372, %v1393
        %1395 = vdwg.mxu0
        %v1397 = vsel %vm1091, %v969, 0
        %v1400 = vsel %vm1091, %v1067, 0
        %1402 = vmatpush.xpose.msra.mxu0 0.0
        %1403 = vmatpush.xpose.msra.mxu0 0.0
        %1404 = vmatpush.xpose.msra.mxu0 0.0
        %1405 = vmatpush.xpose.msra.mxu0 0.0
        %1406 = vmatpush.xpose.msra.mxu0 0.0
        %1407 = vmatpush.xpose.msra.mxu0 0.0
        %1408 = vmatpush.xpose.msra.mxu0 0.0
        %1409 = vmatpush.xpose.msra.mxu0 0.0
        %1410 = vmatpush.xpose.msra.mxu0 0.0
        %1411 = vmatpush.xpose.msra.mxu0 0.0
        %1412 = vmatpush.xpose.msra.mxu0 0.0
        %1413 = vmatpush.xpose.msra.mxu0 0.0
        %1414 = vmatpush.xpose.msra.mxu0 0.0
        %1415 = vmatpush.xpose.msra.mxu0 0.0
        %1416 = vmatpush.xpose.msra.mxu0 0.0
        %v1417 = vand.u32 %v1400, 4294901760
        %1418 = vmatpush.xpose.msra.mxu0 %v1417
        %v1419 = vand.u32 %v1397, 4294901760
        %v1420 = vsub.f32 %v1397, %v1419
        %v1421 = vand.u32 %v1420, 4294901760
        %v1422 = vsub.f32 %v1420, %v1421
        %v1423 = vand.u32 %v1422, 4294901760
        %1424 = vmatmul.f32.gmra.mxu0 %v1423
        %v1425 = vpop.f32.mrf.mxu0
        %v1426 = vadd.f32 0.0, %v1425
        %1427 = vdwg.mxu0
        %1428 = vmatpush.xpose.msra.mxu0 0.0
        %1429 = vmatpush.xpose.msra.mxu0 0.0
        %1430 = vmatpush.xpose.msra.mxu0 0.0
        %1431 = vmatpush.xpose.msra.mxu0 0.0
        %1432 = vmatpush.xpose.msra.mxu0 0.0
        %1433 = vmatpush.xpose.msra.mxu0 0.0
        %1434 = vmatpush.xpose.msra.mxu0 0.0
        %1435 = vmatpush.xpose.msra.mxu0 0.0
        %1436 = vmatpush.xpose.msra.mxu0 0.0
        %1437 = vmatpush.xpose.msra.mxu0 0.0
        %1438 = vmatpush.xpose.msra.mxu0 0.0
        %1439 = vmatpush.xpose.msra.mxu0 0.0
        %1440 = vmatpush.xpose.msra.mxu0 0.0
        %1441 = vmatpush.xpose.msra.mxu0 0.0
        %1442 = vmatpush.xpose.msra.mxu0 0.0
        %v1443 = vand.u32 %v1400, 4294901760
        %v1444 = vsub.f32 %v1400, %v1443
        %v1445 = vand.u32 %v1444, 4294901760
        %v1446 = vsub.f32 %v1444, %v1445
        %v1447 = vand.u32 %v1446, 4294901760
        %1448 = vmatpush.xpose.msra.mxu0 %v1447
        %v1449 = vand.u32 %v1397, 4294901760
        %1450 = vmatmul.f32.gmra.mxu0 %v1449
        %v1451 = vpop.f32.mrf.mxu0
        %v1452 = vadd.f32 %v1426, %v1451
        %1453 = vdwg.mxu0
        %1454 = vmatpush.xpose.msra.mxu0 0.0
        %1455 = vmatpush.xpose.msra.mxu0 0.0
        %1456 = vmatpush.xpose.msra.mxu0 0.0
        %1457 = vmatpush.xpose.msra.mxu0 0.0
        %1458 = vmatpush.xpose.msra.mxu0 0.0
        %1459 = vmatpush.xpose.msra.mxu0 0.0
        %1460 = vmatpush.xpose.msra.mxu0 0.0
        %1461 = vmatpush.xpose.msra.mxu0 0.0
        %1462 = vmatpush.xpose.msra.mxu0 0.0
        %1463 = vmatpush.xpose.msra.mxu0 0.0
        %1464 = vmatpush.xpose.msra.mxu0 0.0
        %1465 = vmatpush.xpose.msra.mxu0 0.0
        %1466 = vmatpush.xpose.msra.mxu0 0.0
        %1467 = vmatpush.xpose.msra.mxu0 0.0
        %1468 = vmatpush.xpose.msra.mxu0 0.0
        %v1469 = vand.u32 %v1400, 4294901760
        %v1470 = vsub.f32 %v1400, %v1469
        %1471 = vmatpush.xpose.msra.mxu0 %v1470
        %v1472 = vand.u32 %v1397, 4294901760
        %v1473 = vsub.f32 %v1397, %v1472
        %1474 = vmatmul.f32.gmra.mxu0 %v1473
        %v1475 = vpop.f32.mrf.mxu0
        %v1476 = vadd.f32 %v1452, %v1475
        %1477 = vdwg.mxu0
        %1478 = vmatpush.xpose.msra.mxu0 0.0
        %1479 = vmatpush.xpose.msra.mxu0 0.0
        %1480 = vmatpush.xpose.msra.mxu0 0.0
        %1481 = vmatpush.xpose.msra.mxu0 0.0
        %1482 = vmatpush.xpose.msra.mxu0 0.0
        %1483 = vmatpush.xpose.msra.mxu0 0.0
        %1484 = vmatpush.xpose.msra.mxu0 0.0
        %1485 = vmatpush.xpose.msra.mxu0 0.0
        %1486 = vmatpush.xpose.msra.mxu0 0.0
        %1487 = vmatpush.xpose.msra.mxu0 0.0
        %1488 = vmatpush.xpose.msra.mxu0 0.0
        %1489 = vmatpush.xpose.msra.mxu0 0.0
        %1490 = vmatpush.xpose.msra.mxu0 0.0
        %1491 = vmatpush.xpose.msra.mxu0 0.0
        %1492 = vmatpush.xpose.msra.mxu0 0.0
        %v1493 = vand.u32 %v1400, 4294901760
        %1494 = vmatpush.xpose.msra.mxu0 %v1493
        %v1495 = vand.u32 %v1397, 4294901760
        %v1496 = vsub.f32 %v1397, %v1495
        %v1497 = vand.u32 %v1496, 4294901760
        %1498 = vmatmul.f32.gmra.mxu0 %v1497
        %v1499 = vpop.f32.mrf.mxu0
        %v1500 = vadd.f32 %v1476, %v1499
        %1501 = vdwg.mxu0
        %1502 = vmatpush.xpose.msra.mxu0 0.0
        %1503 = vmatpush.xpose.msra.mxu0 0.0
        %1504 = vmatpush.xpose.msra.mxu0 0.0
        %1505 = vmatpush.xpose.msra.mxu0 0.0
        %1506 = vmatpush.xpose.msra.mxu0 0.0
        %1507 = vmatpush.xpose.msra.mxu0 0.0
        %1508 = vmatpush.xpose.msra.mxu0 0.0
        %1509 = vmatpush.xpose.msra.mxu0 0.0
        %1510 = vmatpush.xpose.msra.mxu0 0.0
        %1511 = vmatpush.xpose.msra.mxu0 0.0
        %1512 = vmatpush.xpose.msra.mxu0 0.0
        %1513 = vmatpush.xpose.msra.mxu0 0.0
        %1514 = vmatpush.xpose.msra.mxu0 0.0
        %1515 = vmatpush.xpose.msra.mxu0 0.0
        %1516 = vmatpush.xpose.msra.mxu0 0.0
        %v1517 = vand.u32 %v1400, 4294901760
        %v1518 = vsub.f32 %v1400, %v1517
        %v1519 = vand.u32 %v1518, 4294901760
        %1520 = vmatpush.xpose.msra.mxu0 %v1519
        %v1521 = vand.u32 %v1397, 4294901760
        %1522 = vmatmul.f32.gmra.mxu0 %v1521
        %v1523 = vpop.f32.mrf.mxu0
        %v1524 = vadd.f32 %v1500, %v1523
        %1525 = vdwg.mxu0
        %1526 = vmatpush.xpose.msra.mxu0 0.0
        %1527 = vmatpush.xpose.msra.mxu0 0.0
        %1528 = vmatpush.xpose.msra.mxu0 0.0
        %1529 = vmatpush.xpose.msra.mxu0 0.0
        %1530 = vmatpush.xpose.msra.mxu0 0.0
        %1531 = vmatpush.xpose.msra.mxu0 0.0
        %1532 = vmatpush.xpose.msra.mxu0 0.0
        %1533 = vmatpush.xpose.msra.mxu0 0.0
        %1534 = vmatpush.xpose.msra.mxu0 0.0
        %1535 = vmatpush.xpose.msra.mxu0 0.0
        %1536 = vmatpush.xpose.msra.mxu0 0.0
        %1537 = vmatpush.xpose.msra.mxu0 0.0
        %1538 = vmatpush.xpose.msra.mxu0 0.0
        %1539 = vmatpush.xpose.msra.mxu0 0.0
        %1540 = vmatpush.xpose.msra.mxu0 0.0
        %v1541 = vand.u32 %v1400, 4294901760
        %1542 = vmatpush.xpose.msra.mxu0 %v1541
        %v1543 = vand.u32 %v1397, 4294901760
        %1544 = vmatmul.f32.gmra.mxu0 %v1543
        %v1545 = vpop.f32.mrf.mxu0
        %v1546 = vadd.f32 %v1524, %v1545
        %1547 = vdwg.mxu0
        %v1548 = vadd.f32 %v1394, %v1546
        %v1550 = vsel %vm1091, %v992, 0
        %v1553 = vsel %vm1091, %v1090, 0
        %1555 = vmatpush.xpose.msra.mxu0 0.0
        %1556 = vmatpush.xpose.msra.mxu0 0.0
        %1557 = vmatpush.xpose.msra.mxu0 0.0
        %1558 = vmatpush.xpose.msra.mxu0 0.0
        %1559 = vmatpush.xpose.msra.mxu0 0.0
        %1560 = vmatpush.xpose.msra.mxu0 0.0
        %1561 = vmatpush.xpose.msra.mxu0 0.0
        %1562 = vmatpush.xpose.msra.mxu0 0.0
        %1563 = vmatpush.xpose.msra.mxu0 0.0
        %1564 = vmatpush.xpose.msra.mxu0 0.0
        %1565 = vmatpush.xpose.msra.mxu0 0.0
        %1566 = vmatpush.xpose.msra.mxu0 0.0
        %1567 = vmatpush.xpose.msra.mxu0 0.0
        %1568 = vmatpush.xpose.msra.mxu0 0.0
        %1569 = vmatpush.xpose.msra.mxu0 0.0
        %v1570 = vand.u32 %v1553, 4294901760
        %1571 = vmatpush.xpose.msra.mxu0 %v1570
        %v1572 = vand.u32 %v1550, 4294901760
        %v1573 = vsub.f32 %v1550, %v1572
        %v1574 = vand.u32 %v1573, 4294901760
        %v1575 = vsub.f32 %v1573, %v1574
        %v1576 = vand.u32 %v1575, 4294901760
        %1577 = vmatmul.f32.gmra.mxu0 %v1576
        %v1578 = vpop.f32.mrf.mxu0
        %v1579 = vadd.f32 0.0, %v1578
        %1580 = vdwg.mxu0
        %1581 = vmatpush.xpose.msra.mxu0 0.0
        %1582 = vmatpush.xpose.msra.mxu0 0.0
        %1583 = vmatpush.xpose.msra.mxu0 0.0
        %1584 = vmatpush.xpose.msra.mxu0 0.0
        %1585 = vmatpush.xpose.msra.mxu0 0.0
        %1586 = vmatpush.xpose.msra.mxu0 0.0
        %1587 = vmatpush.xpose.msra.mxu0 0.0
        %1588 = vmatpush.xpose.msra.mxu0 0.0
        %1589 = vmatpush.xpose.msra.mxu0 0.0
        %1590 = vmatpush.xpose.msra.mxu0 0.0
        %1591 = vmatpush.xpose.msra.mxu0 0.0
        %1592 = vmatpush.xpose.msra.mxu0 0.0
        %1593 = vmatpush.xpose.msra.mxu0 0.0
        %1594 = vmatpush.xpose.msra.mxu0 0.0
        %1595 = vmatpush.xpose.msra.mxu0 0.0
        %v1596 = vand.u32 %v1553, 4294901760
        %v1597 = vsub.f32 %v1553, %v1596
        %v1598 = vand.u32 %v1597, 4294901760
        %v1599 = vsub.f32 %v1597, %v1598
        %v1600 = vand.u32 %v1599, 4294901760
        %1601 = vmatpush.xpose.msra.mxu0 %v1600
        %v1602 = vand.u32 %v1550, 4294901760
        %1603 = vmatmul.f32.gmra.mxu0 %v1602
        %v1604 = vpop.f32.mrf.mxu0
        %v1605 = vadd.f32 %v1579, %v1604
        %1606 = vdwg.mxu0
        %1607 = vmatpush.xpose.msra.mxu0 0.0
        %1608 = vmatpush.xpose.msra.mxu0 0.0
        %1609 = vmatpush.xpose.msra.mxu0 0.0
        %1610 = vmatpush.xpose.msra.mxu0 0.0
        %1611 = vmatpush.xpose.msra.mxu0 0.0
        %1612 = vmatpush.xpose.msra.mxu0 0.0
        %1613 = vmatpush.xpose.msra.mxu0 0.0
        %1614 = vmatpush.xpose.msra.mxu0 0.0
        %1615 = vmatpush.xpose.msra.mxu0 0.0
        %1616 = vmatpush.xpose.msra.mxu0 0.0
        %1617 = vmatpush.xpose.msra.mxu0 0.0
        %1618 = vmatpush.xpose.msra.mxu0 0.0
        %1619 = vmatpush.xpose.msra.mxu0 0.0
        %1620 = vmatpush.xpose.msra.mxu0 0.0
        %1621 = vmatpush.xpose.msra.mxu0 0.0
        %v1622 = vand.u32 %v1553, 4294901760
        %v1623 = vsub.f32 %v1553, %v1622
        %1624 = vmatpush.xpose.msra.mxu0 %v1623
        %v1625 = vand.u32 %v1550, 4294901760
        %v1626 = vsub.f32 %v1550, %v1625
        %1627 = vmatmul.f32.gmra.mxu0 %v1626
        %v1628 = vpop.f32.mrf.mxu0
        %v1629 = vadd.f32 %v1605, %v1628
        %1630 = vdwg.mxu0
        %1631 = vmatpush.xpose.msra.mxu0 0.0
        %1632 = vmatpush.xpose.msra.mxu0 0.0
        %1633 = vmatpush.xpose.msra.mxu0 0.0
        %1634 = vmatpush.xpose.msra.mxu0 0.0
        %1635 = vmatpush.xpose.msra.mxu0 0.0
        %1636 = vmatpush.xpose.msra.mxu0 0.0
        %1637 = vmatpush.xpose.msra.mxu0 0.0
        %1638 = vmatpush.xpose.msra.mxu0 0.0
        %1639 = vmatpush.xpose.msra.mxu0 0.0
        %1640 = vmatpush.xpose.msra.mxu0 0.0
        %1641 = vmatpush.xpose.msra.mxu0 0.0
        %1642 = vmatpush.xpose.msra.mxu0 0.0
        %1643 = vmatpush.xpose.msra.mxu0 0.0
        %1644 = vmatpush.xpose.msra.mxu0 0.0
        %1645 = vmatpush.xpose.msra.mxu0 0.0
        %v1646 = vand.u32 %v1553, 4294901760
        %1647 = vmatpush.xpose.msra.mxu0 %v1646
        %v1648 = vand.u32 %v1550, 4294901760
        %v1649 = vsub.f32 %v1550, %v1648
        %v1650 = vand.u32 %v1649, 4294901760
        %1651 = vmatmul.f32.gmra.mxu0 %v1650
        %v1652 = vpop.f32.mrf.mxu0
        %v1653 = vadd.f32 %v1629, %v1652
        %1654 = vdwg.mxu0
        %1655 = vmatpush.xpose.msra.mxu0 0.0
        %1656 = vmatpush.xpose.msra.mxu0 0.0
        %1657 = vmatpush.xpose.msra.mxu0 0.0
        %1658 = vmatpush.xpose.msra.mxu0 0.0
        %1659 = vmatpush.xpose.msra.mxu0 0.0
        %1660 = vmatpush.xpose.msra.mxu0 0.0
        %1661 = vmatpush.xpose.msra.mxu0 0.0
        %1662 = vmatpush.xpose.msra.mxu0 0.0
        %1663 = vmatpush.xpose.msra.mxu0 0.0
        %1664 = vmatpush.xpose.msra.mxu0 0.0
        %1665 = vmatpush.xpose.msra.mxu0 0.0
        %1666 = vmatpush.xpose.msra.mxu0 0.0
        %1667 = vmatpush.xpose.msra.mxu0 0.0
        %1668 = vmatpush.xpose.msra.mxu0 0.0
        %1669 = vmatpush.xpose.msra.mxu0 0.0
        %v1670 = vand.u32 %v1553, 4294901760
        %v1671 = vsub.f32 %v1553, %v1670
        %v1672 = vand.u32 %v1671, 4294901760
        %1673 = vmatpush.xpose.msra.mxu0 %v1672
        %v1674 = vand.u32 %v1550, 4294901760
        %1675 = vmatmul.f32.gmra.mxu0 %v1674
        %v1676 = vpop.f32.mrf.mxu0
        %v1677 = vadd.f32 %v1653, %v1676
        %1678 = vdwg.mxu0
        %1679 = vmatpush.xpose.msra.mxu0 0.0
        %1680 = vmatpush.xpose.msra.mxu0 0.0
        %1681 = vmatpush.xpose.msra.mxu0 0.0
        %1682 = vmatpush.xpose.msra.mxu0 0.0
        %1683 = vmatpush.xpose.msra.mxu0 0.0
        %1684 = vmatpush.xpose.msra.mxu0 0.0
        %1685 = vmatpush.xpose.msra.mxu0 0.0
        %1686 = vmatpush.xpose.msra.mxu0 0.0
        %1687 = vmatpush.xpose.msra.mxu0 0.0
        %1688 = vmatpush.xpose.msra.mxu0 0.0
        %1689 = vmatpush.xpose.msra.mxu0 0.0
        %1690 = vmatpush.xpose.msra.mxu0 0.0
        %1691 = vmatpush.xpose.msra.mxu0 0.0
        %1692 = vmatpush.xpose.msra.mxu0 0.0
        %1693 = vmatpush.xpose.msra.mxu0 0.0
        %v1694 = vand.u32 %v1553, 4294901760
        %1695 = vmatpush.xpose.msra.mxu0 %v1694
        %v1696 = vand.u32 %v1550, 4294901760
        %1697 = vmatmul.f32.gmra.mxu0 %v1696
        %v1698 = vpop.f32.mrf.mxu0
        %v1699 = vadd.f32 %v1677, %v1698
        %1700 = vdwg.mxu0
        %v1701 = vadd.f32 %v1548, %v1699
        %v1702 = vsel %vm1091, %v1701, -inf
        %1703 = vmax.xlane.f32.xlu0 %v1702
        %v1704 = vpop.xlane.xlu0 %1703
        %v1705 = vsub.f32 %v1701, %v1704
        %v1706 = vmul.f32 %v1705, 1.442695
        %v1707 = vpow.pop %v1706
        %v1708 = vsel %vm1091, %v1707, 0.0
        %1709 = vadd.xlane.f32.xlu0 %v1708
        %v1710 = vpop.xlane.xlu0 %1709
        %v1711 = vrcp.pop %v1710
        %v1712 = vmul.f32 %v1707, %v1711
        %v1713 = vld [vmem:[%s798] sm:$0xff]
        %v1715 = vsel %vm1091, %v1712, 0
        %1717 = vmatpush.msra.mxu0 0.0
        %1718 = vmatpush.msra.mxu0 0.0
        %1719 = vmatpush.msra.mxu0 0.0
        %1720 = vmatpush.msra.mxu0 0.0
        %1721 = vmatpush.msra.mxu0 0.0
        %1722 = vmatpush.msra.mxu0 0.0
        %1723 = vmatpush.msra.mxu0 0.0
        %1724 = vmatpush.msra.mxu0 0.0
        %1725 = vmatpush.msra.mxu0 0.0
        %1726 = vmatpush.msra.mxu0 0.0
        %1727 = vmatpush.msra.mxu0 0.0
        %1728 = vmatpush.msra.mxu0 0.0
        %1729 = vmatpush.msra.mxu0 0.0
        %1730 = vmatpush.msra.mxu0 0.0
        %1731 = vmatpush.msra.mxu0 0.0
        %v1732 = vand.u32 %v1713, 4294901760
        %1733 = vmatpush.msra.mxu0 %v1732
        %v1734 = vand.u32 %v1715, 4294901760
        %v1735 = vsub.f32 %v1715, %v1734
        %v1736 = vand.u32 %v1735, 4294901760
        %v1737 = vsub.f32 %v1735, %v1736
        %v1738 = vand.u32 %v1737, 4294901760
        %1739 = vmatmul.f32.gmra.mxu0 %v1738
        %v1740 = vpop.f32.mrf.mxu0
        %v1741 = vadd.f32 0.0, %v1740
        %1742 = vdwg.mxu0
        %1743 = vmatpush.msra.mxu0 0.0
        %1744 = vmatpush.msra.mxu0 0.0
        %1745 = vmatpush.msra.mxu0 0.0
        %1746 = vmatpush.msra.mxu0 0.0
        %1747 = vmatpush.msra.mxu0 0.0
        %1748 = vmatpush.msra.mxu0 0.0
        %1749 = vmatpush.msra.mxu0 0.0
        %1750 = vmatpush.msra.mxu0 0.0
        %1751 = vmatpush.msra.mxu0 0.0
        %1752 = vmatpush.msra.mxu0 0.0
        %1753 = vmatpush.msra.mxu0 0.0
        %1754 = vmatpush.msra.mxu0 0.0
        %1755 = vmatpush.msra.mxu0 0.0
        %1756 = vmatpush.msra.mxu0 0.0
        %1757 = vmatpush.msra.mxu0 0.0
        %v1758 = vand.u32 %v1713, 4294901760
        %v1759 = vsub.f32 %v1713, %v1758
        %v1760 = vand.u32 %v1759, 4294901760
        %v1761 = vsub.f32 %v1759, %v1760
        %v1762 = vand.u32 %v1761, 4294901760
        %1763 = vmatpush.msra.mxu0 %v1762
        %v1764 = vand.u32 %v1715, 4294901760
        %1765 = vmatmul.f32.gmra.mxu0 %v1764
        %v1766 = vpop.f32.mrf.mxu0
        %v1767 = vadd.f32 %v1741, %v1766
        %1768 = vdwg.mxu0
        %1769 = vmatpush.msra.mxu0 0.0
        %1770 = vmatpush.msra.mxu0 0.0
        %1771 = vmatpush.msra.mxu0 0.0
        %1772 = vmatpush.msra.mxu0 0.0
        %1773 = vmatpush.msra.mxu0 0.0
        %1774 = vmatpush.msra.mxu0 0.0
        %1775 = vmatpush.msra.mxu0 0.0
        %1776 = vmatpush.msra.mxu0 0.0
        %1777 = vmatpush.msra.mxu0 0.0
        %1778 = vmatpush.msra.mxu0 0.0
        %1779 = vmatpush.msra.mxu0 0.0
        %1780 = vmatpush.msra.mxu0 0.0
        %1781 = vmatpush.msra.mxu0 0.0
        %1782 = vmatpush.msra.mxu0 0.0
        %1783 = vmatpush.msra.mxu0 0.0
        %v1784 = vand.u32 %v1713, 4294901760
        %v1785 = vsub.f32 %v1713, %v1784
        %1786 = vmatpush.msra.mxu0 %v1785
        %v1787 = vand.u32 %v1715, 4294901760
        %v1788 = vsub.f32 %v1715, %v1787
        %1789 = vmatmul.f32.gmra.mxu0 %v1788
        %v1790 = vpop.f32.mrf.mxu0
        %v1791 = vadd.f32 %v1767, %v1790
        %1792 = vdwg.mxu0
        %1793 = vmatpush.msra.mxu0 0.0
        %1794 = vmatpush.msra.mxu0 0.0
        %1795 = vmatpush.msra.mxu0 0.0
        %1796 = vmatpush.msra.mxu0 0.0
        %1797 = vmatpush.msra.mxu0 0.0
        %1798 = vmatpush.msra.mxu0 0.0
        %1799 = vmatpush.msra.mxu0 0.0
        %1800 = vmatpush.msra.mxu0 0.0
        %1801 = vmatpush.msra.mxu0 0.0
        %1802 = vmatpush.msra.mxu0 0.0
        %1803 = vmatpush.msra.mxu0 0.0
        %1804 = vmatpush.msra.mxu0 0.0
        %1805 = vmatpush.msra.mxu0 0.0
        %1806 = vmatpush.msra.mxu0 0.0
        %1807 = vmatpush.msra.mxu0 0.0
        %v1808 = vand.u32 %v1713, 4294901760
        %1809 = vmatpush.msra.mxu0 %v1808
        %v1810 = vand.u32 %v1715, 4294901760
        %v1811 = vsub.f32 %v1715, %v1810
        %v1812 = vand.u32 %v1811, 4294901760
        %1813 = vmatmul.f32.gmra.mxu0 %v1812
        %v1814 = vpop.f32.mrf.mxu0
        %v1815 = vadd.f32 %v1791, %v1814
        %1816 = vdwg.mxu0
        %1817 = vmatpush.msra.mxu0 0.0
        %1818 = vmatpush.msra.mxu0 0.0
        %1819 = vmatpush.msra.mxu0 0.0
        %1820 = vmatpush.msra.mxu0 0.0
        %1821 = vmatpush.msra.mxu0 0.0
        %1822 = vmatpush.msra.mxu0 0.0
        %1823 = vmatpush.msra.mxu0 0.0
        %1824 = vmatpush.msra.mxu0 0.0
        %1825 = vmatpush.msra.mxu0 0.0
        %1826 = vmatpush.msra.mxu0 0.0
        %1827 = vmatpush.msra.mxu0 0.0
        %1828 = vmatpush.msra.mxu0 0.0
        %1829 = vmatpush.msra.mxu0 0.0
        %1830 = vmatpush.msra.mxu0 0.0
        %1831 = vmatpush.msra.mxu0 0.0
        %v1832 = vand.u32 %v1713, 4294901760
        %v1833 = vsub.f32 %v1713, %v1832
        %v1834 = vand.u32 %v1833, 4294901760
        %1835 = vmatpush.msra.mxu0 %v1834
        %v1836 = vand.u32 %v1715, 4294901760
        %1837 = vmatmul.f32.gmra.mxu0 %v1836
        %v1838 = vpop.f32.mrf.mxu0
        %v1839 = vadd.f32 %v1815, %v1838
        %1840 = vdwg.mxu0
        %1841 = vmatpush.msra.mxu0 0.0
        %1842 = vmatpush.msra.mxu0 0.0
        %1843 = vmatpush.msra.mxu0 0.0
        %1844 = vmatpush.msra.mxu0 0.0
        %1845 = vmatpush.msra.mxu0 0.0
        %1846 = vmatpush.msra.mxu0 0.0
        %1847 = vmatpush.msra.mxu0 0.0
        %1848 = vmatpush.msra.mxu0 0.0
        %1849 = vmatpush.msra.mxu0 0.0
        %1850 = vmatpush.msra.mxu0 0.0
        %1851 = vmatpush.msra.mxu0 0.0
        %1852 = vmatpush.msra.mxu0 0.0
        %1853 = vmatpush.msra.mxu0 0.0
        %1854 = vmatpush.msra.mxu0 0.0
        %1855 = vmatpush.msra.mxu0 0.0
        %v1856 = vand.u32 %v1713, 4294901760
        %1857 = vmatpush.msra.mxu0 %v1856
        %v1858 = vand.u32 %v1715, 4294901760
        %1859 = vmatmul.f32.gmra.mxu0 %v1858
        %v1860 = vpop.f32.mrf.mxu0
        %v1861 = vadd.f32 %v1839, %v1860
        %1862 = vdwg.mxu0
        %vm1863 = vcmask 261120
        %1864 = vst.msk [vmem:[%s887] sm:$0xff] %vm1863, %v1861
        %1865 = vst.msk [vmem:[%s894] sm:$0xff] %vm1091, %v1712
        %s1866 = sand.u32 %s393, 1
        %s1867 = scalar_lea.sflag [#allocation4], %s1866
        %s1868 = sand.u32 %s393, 1
        %s1869 = smul.addr %s1868, 8
        %s1870 = scalar_lea.vmem [#allocation20], %s1869
        %s1871 = sand.u32 %s423, 1
        %s1872 = scalar_lea.sflag [#allocation22], %s1871
        %s1873 = sand.u32 %s423, 1
        %s1874 = smul.addr %s1873, 8
        %s1875 = scalar_lea.vmem [#allocation21], %s1874
        // Predicated region
        $region109: #{tpu_custom_call.1} parent=63 // pred_check
          %p1876 = pneg %p403
        $region110: #{tpu_custom_call.1} parent=63 // pred_check_branch
          %1878 = sbr.rel (%p1876) target = $region112
        $region111: #{tpu_custom_call.1} parent=63 // pred_region
          %1880 = vsyncadd %s1867, 0
          %s1881 = sadd.s32 %s55, %s54
          %s1882 = smul.addr %s53, 2
          %s1883 = sadd.s32 %s1881, %s1882
          %s1884 = smul.addr %s1883, 8
          %s1885 = scalar_lea.hbm %s11, %s1884
          %s1887 = sshll.u32 %s1870, 4
          %s1888 = int_to_ptr.vmem [resolvable:$true] %s1887
          %s1889 = sshll.u32 %s1885, 4
          %s1890 = int_to_ptr.hbm [resolvable:$true] %s1889
          %1892 = dma.vmem_to_hbm [thread:$0]  %s1888, 128, %s1890, %s1867
        $region112: #{tpu_custom_call.1} parent=63 // pred_fallthru
          _
        // Predicated region
        $region113: #{tpu_custom_call.1} parent=63 // pred_check
          %p1893 = pneg %p433
        $region114: #{tpu_custom_call.1} parent=63 // pred_check_branch
          %1895 = sbr.rel (%p1893) target = $region116
        $region115: #{tpu_custom_call.1} parent=63 // pred_region
          %1897 = vsyncadd %s1872, 0
          %s1898 = sadd.s32 %s55, %s54
          %s1899 = smul.addr %s53, 2
          %s1900 = sadd.s32 %s1898, %s1899
          %s1901 = smul.addr %s1900, 8
          %s1902 = scalar_lea.hbm %s12, %s1901
          %s1904 = sshll.u32 %s1875, 4
          %s1905 = int_to_ptr.vmem [resolvable:$true] %s1904
          %s1906 = sshll.u32 %s1902, 4
          %s1907 = int_to_ptr.hbm [resolvable:$true] %s1906
          %1909 = dma.vmem_to_hbm [thread:$0]  %s1905, 128, %s1907, %s1872
        $region116: #{tpu_custom_call.1} parent=63 // pred_fallthru
          _
      $region64: #{tpu_custom_call.1} parent=5 // pred_fallthru
        _
      %p1910 = scmp.le.s32.totalorder 2, %s43
      // Predicated region
      $region117: #{tpu_custom_call.1} parent=5 // pred_check
        %p1911 = pneg %p1910
      $region118: #{tpu_custom_call.1} parent=5 // pred_check_branch
        %1913 = sbr.rel (%p1911) target = $region120
      $region119: #{tpu_custom_call.1} parent=5 // pred_region
        %s1914 = ssub.s32 %s43, 2
        // Predicated region
        $region121: #{tpu_custom_call.1} parent=119 // pred_check
          %p1915 = pneg %p409
        $region122: #{tpu_custom_call.1} parent=119 // pred_check_branch
          %1917 = sbr.rel (%p1915) target = $region124
        $region123: #{tpu_custom_call.1} parent=119 // pred_region
          %s1918 = sand.u32 %s394, 1
          %s1919 = scalar_lea.sflag [#allocation4], %s1918
          %s1920 = sand.u32 %s394, 1
          %s1921 = smul.addr %s1920, 8
          %s1922 = scalar_lea.vmem [#allocation20], %s1921
          %1924 = dma.done %s1919, 128
        $region124: #{tpu_custom_call.1} parent=119 // pred_fallthru
          _
        // Predicated region
        $region125: #{tpu_custom_call.1} parent=119 // pred_check
          %p1925 = pneg %p439
        $region126: #{tpu_custom_call.1} parent=119 // pred_check_branch
          %1927 = sbr.rel (%p1925) target = $region128
        $region127: #{tpu_custom_call.1} parent=119 // pred_region
          %s1928 = sand.u32 %s424, 1
          %s1929 = scalar_lea.sflag [#allocation22], %s1928
          %s1930 = sand.u32 %s424, 1
          %s1931 = smul.addr %s1930, 8
          %s1932 = scalar_lea.vmem [#allocation21], %s1931
          %1934 = dma.done %s1929, 128
        $region128: #{tpu_custom_call.1} parent=119 // pred_fallthru
          _
      $region120: #{tpu_custom_call.1} parent=5 // pred_fallthru
        _
    $region6: #{tpu_custom_call.1} parent=1 // loop_footer
      %s47 = sadd.s32 1, %s43
    $region7: #{tpu_custom_call.1} parent=1 // loop_footer_branch
      %42 = sbr.rel target = $region3
    $region8: #{tpu_custom_call.1} parent=1 // loop_exit
      _
    %1935 = vsyncpa [#allocation3], 1
    %s1936 = scalar_lea.sflag [#allocation3], 1
    %1937 = vsyncpa %s1936, 1
    %1938 = vsyncpa [#allocation6], 1
    %s1939 = scalar_lea.sflag [#allocation6], 1
    %1940 = vsyncpa %s1939, 1
    %1941 = vsyncpa [#allocation9], 1
    %s1942 = scalar_lea.sflag [#allocation9], 1
    %1943 = vsyncpa %s1942, 1
    %1944 = vsyncpa [#allocation12], 1
    %s1945 = scalar_lea.sflag [#allocation12], 1
    %1946 = vsyncpa %s1945, 1
    %1947 = vsyncpa [#allocation15], 1
    %s1948 = scalar_lea.sflag [#allocation15], 1
    %1949 = vsyncpa %s1948, 1
    %1950 = vsyncpa [#allocation18], 1
    %s1951 = scalar_lea.sflag [#allocation18], 1
    %1952 = vsyncpa %s1951, 1
    %1953 = vsyncpa [#allocation4], 1
    %s1954 = scalar_lea.sflag [#allocation4], 1
    %1955 = vsyncpa %s1954, 1
    %1956 = vsyncpa [#allocation22], 1
    %s1957 = scalar_lea.sflag [#allocation22], 1
    %1958 = vsyncpa %s1957, 1

</llo_original>
